<compile_context>
chip_gen: v7x
topology: tpu7x:2x2x1
jax: 0.10.0
libtpu: 0.0.40
codegen_flags: <defaults>
</compile_context>

<pallas_src>
import jax
import jax.numpy as jnp
from jax import lax
from jax.experimental import pallas as pl
from jax.experimental.pallas import tpu as pltpu

# ---- problem sizes (small, synthetic) ----
N_NODES = 16
N_EDGES = 64
D_NODE = 32
D_EDGE = 32
D_STATE = 8
D_HID = 64
D_IN = 2 * D_NODE + D_EDGE + D_STATE  # 104 = concat([x_src, e, x_dst, state])


def _silu(x):
    return x * jax.nn.sigmoid(x)


def _fused_first_layer(x_src, e_in, x_dst, s, w1, b1):
    """concat([x_src, e, x_dst, state]) @ w1 + b1 as split bf16 matmuls (f32 acc).

    w1 is the column-fused (layers|gates) first-layer weight: (D_IN, 2H).
    The global-state term is computed once per fused call and broadcast.
    """
    o0, o1, o2 = D_NODE, D_NODE + D_EDGE, 2 * D_NODE + D_EDGE
    h = jnp.dot(x_src, w1[:o0], preferred_element_type=jnp.float32)
    h = h + jnp.dot(e_in, w1[o0:o1], preferred_element_type=jnp.float32)
    h = h + jnp.dot(x_dst, w1[o1:o2], preferred_element_type=jnp.float32)
    h = h + jnp.dot(s, w1[o2:], preferred_element_type=jnp.float32)  # (1, 2H)
    return h + b1


def _fused_gated_mlp(x_src, e_in, x_dst, s, w1, b1, w2, b2, out_dim):
    """GatedMLP with layers/gates branches fused into single wide matmuls.

    w2 is block-diagonal: h @ w2 = [silu_h_c @ cw2 | silu_h_g @ gw2].
    layers branch: activation after every layer; gates branch: no final act,
    then a sigmoid gate — identical to GatedMLP_norm with SiLU.
    """
    h = _silu(_fused_first_layer(x_src, e_in, x_dst, s, w1, b1))      # (E, 2H) f32
    h2 = jnp.dot(h.astype(jnp.bfloat16), w2,
                 preferred_element_type=jnp.float32) + b2             # (E, 2*out)
    hc = h2[:, :out_dim]          # "layers" branch pre-activation (bias in b2)
    hg = h2[:, out_dim:]          # "gates" branch (no final activation)
    return _silu(hc) * jax.nn.sigmoid(hg)


def chgnet_conv_kernel(
    node_ref, edge_ref, state_ref, idx_ref, snw_ref, sew_ref,
    e_w1_ref, e_b1_ref, e_w2_ref, e_b2_ref,
    n_w1_ref, n_b1_ref, n_w2_ref, n_b2_ref,
    now_ref, stw_ref, stb_ref,
    new_node_ref, new_edge_ref, new_state_ref,
):
    x = node_ref[...]            # (N, Dn) f32
    e = edge_ref[...]            # (E, De) f32
    s = state_ref[...]           # (1, Ds) f32

    n_nodes = x.shape[0]
    n_edges = e.shape[0]

    # One (N, 2E) transposed one-hot encodes BOTH gathers and the scatter.
    # oh_t[n, r] = 1  iff  idx[0, r] == n.  Columns [0,E) = src, [E,2E) = dst.
    # Exactly representable in bf16, so bf16 MXU operands lose no precision here.
    iota_n = lax.broadcasted_iota(jnp.int32, (n_nodes, 2 * n_edges), 0)
    oh_t = (iota_n == idx_ref[...]).astype(jnp.bfloat16)              # (N, 2E)

    # Gather x[src] and x[dst] with one 128-row transposed-LHS MXU contraction.
    gathered = lax.dot_general(
        oh_t, x.astype(jnp.bfloat16),
        dimension_numbers=(((0,), (0,)), ((), ())),
        preferred_element_type=jnp.float32).astype(jnp.bfloat16)      # (2E, Dn)
    x_src = gathered[:n_edges]    # atom_i
    x_dst = gathered[n_edges:]    # atom_j

    s_bf = s.astype(jnp.bfloat16)

    # ---- edge update (uses ORIGINAL edge features) ----
    e_upd = _fused_gated_mlp(
        x_src, e.astype(jnp.bfloat16), x_dst, s_bf,
        e_w1_ref[...], e_b1_ref[...], e_w2_ref[...], e_b2_ref[...], D_EDGE)
    new_e = e + e_upd * sew_ref[...]             # shared_edge_weights + residual
    new_edge_ref[...] = new_e

    # ---- node update (messages use UPDATED edge features) ----
    msg = _fused_gated_mlp(
        x_src, new_e.astype(jnp.bfloat16), x_dst, s_bf,
        n_w1_ref[...], n_b1_ref[...], n_w2_ref[...], n_b2_ref[...], D_NODE)
    msg = msg * snw_ref[...]                     # shared_node_weights

    # scatter-sum onto destination nodes: agg = oh_dst @ msg
    # (oh_dst is just the dst half of the already-built one-hot).
    agg = jnp.dot(oh_t[:, n_edges:], msg.astype(jnp.bfloat16),
                  preferred_element_type=jnp.float32)                 # (N, Dn)

    node_upd = jnp.dot(agg.astype(jnp.bfloat16), now_ref[...],
                       preferred_element_type=jnp.float32)
    new_x = x + node_upd
    new_node_ref[...] = new_x

    # ---- state update (mean over UPDATED node features) ----
    node_avg = jnp.mean(new_x, axis=0, keepdims=True)                 # (1, Dn)
    stw = stw_ref[...]                                                # f32 (tiny)
    hs = jnp.dot(s, stw[:D_STATE], preferred_element_type=jnp.float32)
    hs = hs + jnp.dot(node_avg, stw[D_STATE:],
                      preferred_element_type=jnp.float32)
    new_state_ref[...] = _silu(hs + stb_ref[...])    # MLP activate_last=True


def _fuse_params(p):
    """Pre-fuse layers/gates branches and cast MXU weight operands to bf16."""
    bf = jnp.bfloat16

    def fuse_gated(prefix):
        w1 = jnp.concatenate([p[f"{prefix}cw1"], p[f"{prefix}gw1"]],
                             axis=1).astype(bf)                       # (104, 128)
        b1 = jnp.concatenate([p[f"{prefix}cb1"], p[f"{prefix}gb1"]], axis=1)
        cw2, gw2 = p[f"{prefix}cw2"], p[f"{prefix}gw2"]
        z = jnp.zeros_like(cw2)
        w2 = jnp.concatenate(
            [jnp.concatenate([cw2, z], axis=1),
             jnp.concatenate([z, gw2], axis=1)], axis=0).astype(bf)   # (128, 64)
        b2 = jnp.concatenate([p[f"{prefix}cb2"], p[f"{prefix}gb2"]], axis=1)
        return w1, b1, w2, b2

    e_w1, e_b1, e_w2, e_b2 = fuse_gated("e")
    n_w1, n_b1, n_w2, n_b2 = fuse_gated("n")
    return (e_w1, e_b1, e_w2, e_b2, n_w1, n_b1, n_w2, n_b2,
            p["now"].astype(bf), p["stw"], p["stb"])


@jax.jit
def chgnet_graph_conv(node_feat, edge_feat, state_attr, src, dst,
                      shared_node_w, shared_edge_w, params):
    n, dn = node_feat.shape
    m, de = edge_feat.shape
    ds = state_attr.shape[1]

    # lane-dense edge indices: one (1, 2E) int32 row = [src | dst]
    idx = jnp.concatenate([src, dst]).reshape(1, 2 * m).astype(jnp.int32)
    fused = _fuse_params(params)
    inputs = (node_feat, edge_feat, state_attr, idx,
              shared_node_w, shared_edge_w, *fused)

    vmem = pl.BlockSpec(memory_space=pltpu.MemorySpace.VMEM)
    out_shape = (
        jax.ShapeDtypeStruct((n, dn), jnp.float32),   # new node features
        jax.ShapeDtypeStruct((m, de), jnp.float32),   # new edge features
        jax.ShapeDtypeStruct((1, ds), jnp.float32),   # new state attrs
    )
    return pl.pallas_call(
        chgnet_conv_kernel,
        out_shape=out_shape,
        in_specs=[vmem] * len(inputs),
        out_specs=(vmem, vmem, vmem),
        # residual updates land in the node / edge feature buffers in place
        input_output_aliases={0: 0, 1: 1},
    )(*inputs)


# ---------------- deterministic parameter init ----------------
PARAM_KEYS = [
    "ecw1", "ecb1", "ecw2", "ecb2",   # edge GatedMLP "layers" branch
    "egw1", "egb1", "egw2", "egb2",   # edge GatedMLP "gates" branch
    "ncw1", "ncb1", "ncw2", "ncb2",   # node GatedMLP "layers" branch
    "ngw1", "ngb1", "ngw2", "ngb2",   # node GatedMLP "gates" branch
    "now",                            # node_out_func Linear (no bias)
    "stw", "stb",                     # state MLP
]


def init_params(key):
    keys = iter(jax.random.split(key, len(PARAM_KEYS)))

    def lin_w(fan_in, fan_out):
        lim = 1.0 / float(fan_in) ** 0.5
        return jax.random.uniform(next(keys), (fan_in, fan_out),
                                  jnp.float32, -lim, lim)

    def lin_b(fan_in, fan_out):
        lim = 1.0 / float(fan_in) ** 0.5
        return jax.random.uniform(next(keys), (1, fan_out),
                                  jnp.float32, -lim, lim)

    p = {}
    for prefix, out_dim in (("e", D_EDGE), ("n", D_NODE)):
        for branch in ("c", "g"):   # c = layers, g = gates
            p[f"{prefix}{branch}w1"] = lin_w(D_IN, D_HID)
            p[f"{prefix}{branch}b1"] = lin_b(D_IN, D_HID)
            p[f"{prefix}{branch}w2"] = lin_w(D_HID, out_dim)
            p[f"{prefix}{branch}b2"] = lin_b(D_HID, out_dim)
    p["now"] = lin_w(D_NODE, D_NODE)                    # node_out (no bias)
    p["stw"] = lin_w(D_STATE + D_NODE, D_STATE)
    p["stb"] = lin_b(D_STATE + D_NODE, D_STATE)
    return p


# ---------------- pure-JAX (f32) reference for validation ----------------
def reference(node_feat, edge_feat, state_attr, src, dst, snw, sew, p):
    x_src = node_feat[src]
    x_dst = node_feat[dst]
    s_b = jnp.broadcast_to(state_attr, (src.shape[0], state_attr.shape[1]))

    def gated(e_in, cw1, cb1, cw2, cb2, gw1, gb1, gw2, gb2):
        inp = jnp.concatenate([x_src, e_in, x_dst, s_b], axis=1)
        hc = jax.nn.silu(jax.nn.silu(inp @ cw1 + cb1) @ cw2 + cb2)
        hg = jax.nn.silu(inp @ gw1 + gb1) @ gw2 + gb2
        return hc * jax.nn.sigmoid(hg)

    e_upd = gated(edge_feat, p["ecw1"], p["ecb1"], p["ecw2"], p["ecb2"],
                  p["egw1"], p["egb1"], p["egw2"], p["egb2"]) * sew
    new_e = edge_feat + e_upd

    msg = gated(new_e, p["ncw1"], p["ncb1"], p["ncw2"], p["ncb2"],
                p["ngw1"], p["ngb1"], p["ngw2"], p["ngb2"]) * snw
    agg = jax.ops.segment_sum(msg, dst, num_segments=node_feat.shape[0])
    new_x = node_feat + agg @ p["now"]

    node_avg = jnp.mean(new_x, axis=0, keepdims=True)
    new_s = jax.nn.silu(
        jnp.concatenate([state_attr, node_avg], axis=1) @ p["stw"] + p["stb"])
    return new_x, new_e, new_s


if __name__ == "__main__":
    key = jax.random.PRNGKey(0)
    k_node, k_edge, k_state, k_src, k_dst, k_snw, k_sew, k_par = \
        jax.random.split(key, 8)

    node_feat = jax.random.normal(k_node, (N_NODES, D_NODE), jnp.float32)
    edge_feat = jax.random.normal(k_edge, (N_EDGES, D_EDGE), jnp.float32)
    state_attr = jax.random.normal(k_state, (1, D_STATE), jnp.float32)
    src = jax.random.randint(k_src, (N_EDGES,), 0, N_NODES, dtype=jnp.int32)
    dst = jax.random.randint(k_dst, (N_EDGES,), 0, N_NODES, dtype=jnp.int32)
    shared_node_w = jax.nn.sigmoid(
        jax.random.normal(k_snw, (N_EDGES, D_NODE), jnp.float32))
    shared_edge_w = jax.nn.sigmoid(
        jax.random.normal(k_sew, (N_EDGES, D_EDGE), jnp.float32))
    params = init_params(k_par)

    # f32 reference first (kernel inputs are never reused afterwards).
    ref = reference(node_feat, edge_feat, state_attr, src, dst,
                    shared_node_w, shared_edge_w, params)
    ref = jax.block_until_ready(ref)

    out = chgnet_graph_conv(node_feat, edge_feat, state_attr, src, dst,
                            shared_node_w, shared_edge_w, params)
    out = jax.block_until_ready(out)

    # Tolerance sized for bf16 MXU operands with f32 accumulation.
    for got, want in zip(out, ref):
        assert got.shape == want.shape and got.dtype == want.dtype
        assert jnp.allclose(got, want, atol=2e-2, rtol=2e-2), \
            float(jnp.max(jnp.abs(got - want)))

    print("KERNEL_OK")
</pallas_src>

<mosaic_0001>
module attributes {stable_mosaic.version = 11 : i64} {
  func.func @chgnet_conv_kernel(%arg0: memref<16x32xf32, #tpu.memory_space<vmem>>, %arg1: memref<64x32xf32, #tpu.memory_space<vmem>>, %arg2: memref<1x8xf32, #tpu.memory_space<vmem>>, %arg3: memref<1x128xi32, #tpu.memory_space<vmem>>, %arg4: memref<64x32xf32, #tpu.memory_space<vmem>>, %arg5: memref<64x32xf32, #tpu.memory_space<vmem>>, %arg6: memref<104x128xbf16, #tpu.memory_space<vmem>>, %arg7: memref<1x128xf32, #tpu.memory_space<vmem>>, %arg8: memref<128x64xbf16, #tpu.memory_space<vmem>>, %arg9: memref<1x64xf32, #tpu.memory_space<vmem>>, %arg10: memref<104x128xbf16, #tpu.memory_space<vmem>>, %arg11: memref<1x128xf32, #tpu.memory_space<vmem>>, %arg12: memref<128x64xbf16, #tpu.memory_space<vmem>>, %arg13: memref<1x64xf32, #tpu.memory_space<vmem>>, %arg14: memref<32x32xbf16, #tpu.memory_space<vmem>>, %arg15: memref<40x8xf32, #tpu.memory_space<vmem>>, %arg16: memref<1x8xf32, #tpu.memory_space<vmem>>, %arg17: memref<16x32xf32, #tpu.memory_space<vmem>>, %arg18: memref<64x32xf32, #tpu.memory_space<vmem>>, %arg19: memref<1x8xf32, #tpu.memory_space<vmem>>) attributes {dimension_semantics = [], scalar_prefetch = 0 : i64, scratch_operands = 0 : i64, tpu.core_type = #tpu.core_type<tc>} {
    %c0 = arith.constant 0 : index
    %c0_0 = arith.constant 0 : index
    %0 = vector.load %arg0[%c0, %c0_0] : memref<16x32xf32, #tpu.memory_space<vmem>>, vector<16x32xf32>
    %c0_1 = arith.constant 0 : index
    %c0_2 = arith.constant 0 : index
    %1 = vector.load %arg1[%c0_1, %c0_2] : memref<64x32xf32, #tpu.memory_space<vmem>>, vector<64x32xf32>
    %c0_3 = arith.constant 0 : index
    %c0_4 = arith.constant 0 : index
    %2 = vector.load %arg2[%c0_3, %c0_4] : memref<1x8xf32, #tpu.memory_space<vmem>>, vector<1x8xf32>
    %3 = tpu.iota {dimensions = array<i32: 0>} : vector<16x128xi32>
    %c0_5 = arith.constant 0 : index
    %c0_6 = arith.constant 0 : index
    %4 = vector.load %arg3[%c0_5, %c0_6] : memref<1x128xi32, #tpu.memory_space<vmem>>, vector<1x128xi32>
    %5 = vector.broadcast %4 : vector<1x128xi32> to vector<16x128xi32>
    %6 = arith.cmpi eq, %3, %5 : vector<16x128xi32>
    %7 = arith.extui %6 : vector<16x128xi1> to vector<16x128xi32>
    %8 = arith.sitofp %7 : vector<16x128xi32> to vector<16x128xf32>
    %9 = arith.truncf %8 : vector<16x128xf32> to vector<16x128xbf16>
    %10 = arith.truncf %0 : vector<16x32xf32> to vector<16x32xbf16>
    %cst = arith.constant dense<0.000000e+00> : vector<128x32xf32>
    %11 = tpu.matmul %9, %10, %cst {dimension_numbers = #tpu.dot_dimension_numbers<[0], [0], [1], [1], [0, 1, 1, 1], [], []>} : vector<16x128xbf16>, vector<16x32xbf16>, vector<128x32xf32> -> vector<128x32xf32>
    %12 = arith.truncf %11 : vector<128x32xf32> to vector<128x32xbf16>
    %13 = vector.extract_strided_slice %12 {offsets = [0, 0], sizes = [64, 32], strides = [1, 1]} : vector<128x32xbf16> to vector<64x32xbf16>
    %14 = vector.extract_strided_slice %12 {offsets = [64, 0], sizes = [64, 32], strides = [1, 1]} : vector<128x32xbf16> to vector<64x32xbf16>
    %15 = arith.truncf %2 : vector<1x8xf32> to vector<1x8xbf16>
    %16 = arith.truncf %1 : vector<64x32xf32> to vector<64x32xbf16>
    %c0_7 = arith.constant 0 : index
    %c0_8 = arith.constant 0 : index
    %17 = vector.load %arg6[%c0_7, %c0_8] : memref<104x128xbf16, #tpu.memory_space<vmem>>, vector<104x128xbf16>
    %c0_9 = arith.constant 0 : index
    %c0_10 = arith.constant 0 : index
    %18 = vector.load %arg7[%c0_9, %c0_10] : memref<1x128xf32, #tpu.memory_space<vmem>>, vector<1x128xf32>
    %c0_11 = arith.constant 0 : index
    %c0_12 = arith.constant 0 : index
    %19 = vector.load %arg8[%c0_11, %c0_12] : memref<128x64xbf16, #tpu.memory_space<vmem>>, vector<128x64xbf16>
    %c0_13 = arith.constant 0 : index
    %c0_14 = arith.constant 0 : index
    %20 = vector.load %arg9[%c0_13, %c0_14] : memref<1x64xf32, #tpu.memory_space<vmem>>, vector<1x64xf32>
    %21 = vector.extract_strided_slice %17 {offsets = [0, 0], sizes = [32, 128], strides = [1, 1]} : vector<104x128xbf16> to vector<32x128xbf16>
    %cst_15 = arith.constant dense<0.000000e+00> : vector<64x128xf32>
    %22 = tpu.matmul %13, %21, %cst_15 {dimension_numbers = #tpu.dot_dimension_numbers<[1], [0], [0], [1], [0, 0, 1, 1], [], []>} : vector<64x32xbf16>, vector<32x128xbf16>, vector<64x128xf32> -> vector<64x128xf32>
    %23 = vector.extract_strided_slice %17 {offsets = [32, 0], sizes = [32, 128], strides = [1, 1]} : vector<104x128xbf16> to vector<32x128xbf16>
    %cst_16 = arith.constant dense<0.000000e+00> : vector<64x128xf32>
    %24 = tpu.matmul %16, %23, %cst_16 {dimension_numbers = #tpu.dot_dimension_numbers<[1], [0], [0], [1], [0, 0, 1, 1], [], []>} : vector<64x32xbf16>, vector<32x128xbf16>, vector<64x128xf32> -> vector<64x128xf32>
    %25 = arith.addf %22, %24 : vector<64x128xf32>
    %26 = vector.extract_strided_slice %17 {offsets = [64, 0], sizes = [32, 128], strides = [1, 1]} : vector<104x128xbf16> to vector<32x128xbf16>
    %cst_17 = arith.constant dense<0.000000e+00> : vector<64x128xf32>
    %27 = tpu.matmul %14, %26, %cst_17 {dimension_numbers = #tpu.dot_dimension_numbers<[1], [0], [0], [1], [0, 0, 1, 1], [], []>} : vector<64x32xbf16>, vector<32x128xbf16>, vector<64x128xf32> -> vector<64x128xf32>
    %28 = arith.addf %25, %27 : vector<64x128xf32>
    %29 = vector.extract_strided_slice %17 {offsets = [96, 0], sizes = [8, 128], strides = [1, 1]} : vector<104x128xbf16> to vector<8x128xbf16>
    %cst_18 = arith.constant dense<0.000000e+00> : vector<1x128xf32>
    %30 = tpu.matmul %15, %29, %cst_18 {dimension_numbers = #tpu.dot_dimension_numbers<[1], [0], [0], [1], [0, 0, 1, 1], [], []>} : vector<1x8xbf16>, vector<8x128xbf16>, vector<1x128xf32> -> vector<1x128xf32>
    %31 = vector.broadcast %30 : vector<1x128xf32> to vector<64x128xf32>
    %32 = arith.addf %28, %31 : vector<64x128xf32>
    %33 = vector.broadcast %18 : vector<1x128xf32> to vector<64x128xf32>
    %34 = arith.addf %32, %33 : vector<64x128xf32>
    %35 = arith.negf %34 : vector<64x128xf32>
    %36 = math.exp %35 : vector<64x128xf32>
    %cst_19 = arith.constant 1.000000e+00 : f32
    %37 = vector.broadcast %cst_19 : f32 to vector<64x128xf32>
    %38 = arith.addf %37, %36 : vector<64x128xf32>
    %39 = arith.divf %37, %38 : vector<64x128xf32>
    %40 = arith.mulf %34, %39 : vector<64x128xf32>
    %41 = arith.truncf %40 : vector<64x128xf32> to vector<64x128xbf16>
    %cst_20 = arith.constant dense<0.000000e+00> : vector<64x64xf32>
    %42 = tpu.matmul %41, %19, %cst_20 {dimension_numbers = #tpu.dot_dimension_numbers<[1], [0], [0], [1], [0, 0, 1, 1], [], []>} : vector<64x128xbf16>, vector<128x64xbf16>, vector<64x64xf32> -> vector<64x64xf32>
    %43 = vector.broadcast %20 : vector<1x64xf32> to vector<64x64xf32>
    %44 = arith.addf %42, %43 : vector<64x64xf32>
    %45 = vector.extract_strided_slice %44 {offsets = [0, 0], sizes = [64, 32], strides = [1, 1]} : vector<64x64xf32> to vector<64x32xf32>
    %46 = vector.extract_strided_slice %44 {offsets = [0, 32], sizes = [64, 32], strides = [1, 1]} : vector<64x64xf32> to vector<64x32xf32>
    %47 = arith.negf %45 : vector<64x32xf32>
    %48 = math.exp %47 : vector<64x32xf32>
    %cst_21 = arith.constant 1.000000e+00 : f32
    %49 = vector.broadcast %cst_21 : f32 to vector<64x32xf32>
    %50 = arith.addf %49, %48 : vector<64x32xf32>
    %51 = arith.divf %49, %50 : vector<64x32xf32>
    %52 = arith.mulf %45, %51 : vector<64x32xf32>
    %53 = arith.negf %46 : vector<64x32xf32>
    %54 = math.exp %53 : vector<64x32xf32>
    %cst_22 = arith.constant 1.000000e+00 : f32
    %55 = vector.broadcast %cst_22 : f32 to vector<64x32xf32>
    %56 = arith.addf %55, %54 : vector<64x32xf32>
    %57 = arith.divf %55, %56 : vector<64x32xf32>
    %58 = arith.mulf %52, %57 : vector<64x32xf32>
    %c0_23 = arith.constant 0 : index
    %c0_24 = arith.constant 0 : index
    %59 = vector.load %arg5[%c0_23, %c0_24] : memref<64x32xf32, #tpu.memory_space<vmem>>, vector<64x32xf32>
    %60 = arith.mulf %58, %59 : vector<64x32xf32>
    %61 = arith.addf %1, %60 : vector<64x32xf32>
    %c0_25 = arith.constant 0 : index
    %c0_26 = arith.constant 0 : index
    %62 = vector.load %arg18[%c0_25, %c0_26] : memref<64x32xf32, #tpu.memory_space<vmem>>, vector<64x32xf32>
    tpu.vector_store %arg18[%c0_25, %c0_26], %61 {strides = array<i32>} : memref<64x32xf32, #tpu.memory_space<vmem>>, vector<64x32xf32>,
    %63 = arith.truncf %61 : vector<64x32xf32> to vector<64x32xbf16>
    %c0_27 = arith.constant 0 : index
    %c0_28 = arith.constant 0 : index
    %64 = vector.load %arg10[%c0_27, %c0_28] : memref<104x128xbf16, #tpu.memory_space<vmem>>, vector<104x128xbf16>
    %c0_29 = arith.constant 0 : index
    %c0_30 = arith.constant 0 : index
    %65 = vector.load %arg11[%c0_29, %c0_30] : memref<1x128xf32, #tpu.memory_space<vmem>>, vector<1x128xf32>
    %c0_31 = arith.constant 0 : index
    %c0_32 = arith.constant 0 : index
    %66 = vector.load %arg12[%c0_31, %c0_32] : memref<128x64xbf16, #tpu.memory_space<vmem>>, vector<128x64xbf16>
    %c0_33 = arith.constant 0 : index
    %c0_34 = arith.constant 0 : index
    %67 = vector.load %arg13[%c0_33, %c0_34] : memref<1x64xf32, #tpu.memory_space<vmem>>, vector<1x64xf32>
    %68 = vector.extract_strided_slice %64 {offsets = [0, 0], sizes = [32, 128], strides = [1, 1]} : vector<104x128xbf16> to vector<32x128xbf16>
    %cst_35 = arith.constant dense<0.000000e+00> : vector<64x128xf32>
    %69 = tpu.matmul %13, %68, %cst_35 {dimension_numbers = #tpu.dot_dimension_numbers<[1], [0], [0], [1], [0, 0, 1, 1], [], []>} : vector<64x32xbf16>, vector<32x128xbf16>, vector<64x128xf32> -> vector<64x128xf32>
    %70 = vector.extract_strided_slice %64 {offsets = [32, 0], sizes = [32, 128], strides = [1, 1]} : vector<104x128xbf16> to vector<32x128xbf16>
    %cst_36 = arith.constant dense<0.000000e+00> : vector<64x128xf32>
    %71 = tpu.matmul %63, %70, %cst_36 {dimension_numbers = #tpu.dot_dimension_numbers<[1], [0], [0], [1], [0, 0, 1, 1], [], []>} : vector<64x32xbf16>, vector<32x128xbf16>, vector<64x128xf32> -> vector<64x128xf32>
    %72 = arith.addf %69, %71 : vector<64x128xf32>
    %73 = vector.extract_strided_slice %64 {offsets = [64, 0], sizes = [32, 128], strides = [1, 1]} : vector<104x128xbf16> to vector<32x128xbf16>
    %cst_37 = arith.constant dense<0.000000e+00> : vector<64x128xf32>
    %74 = tpu.matmul %14, %73, %cst_37 {dimension_numbers = #tpu.dot_dimension_numbers<[1], [0], [0], [1], [0, 0, 1, 1], [], []>} : vector<64x32xbf16>, vector<32x128xbf16>, vector<64x128xf32> -> vector<64x128xf32>
    %75 = arith.addf %72, %74 : vector<64x128xf32>
    %76 = vector.extract_strided_slice %64 {offsets = [96, 0], sizes = [8, 128], strides = [1, 1]} : vector<104x128xbf16> to vector<8x128xbf16>
    %cst_38 = arith.constant dense<0.000000e+00> : vector<1x128xf32>
    %77 = tpu.matmul %15, %76, %cst_38 {dimension_numbers = #tpu.dot_dimension_numbers<[1], [0], [0], [1], [0, 0, 1, 1], [], []>} : vector<1x8xbf16>, vector<8x128xbf16>, vector<1x128xf32> -> vector<1x128xf32>
    %78 = vector.broadcast %77 : vector<1x128xf32> to vector<64x128xf32>
    %79 = arith.addf %75, %78 : vector<64x128xf32>
    %80 = vector.broadcast %65 : vector<1x128xf32> to vector<64x128xf32>
    %81 = arith.addf %79, %80 : vector<64x128xf32>
    %82 = arith.negf %81 : vector<64x128xf32>
    %83 = math.exp %82 : vector<64x128xf32>
    %cst_39 = arith.constant 1.000000e+00 : f32
    %84 = vector.broadcast %cst_39 : f32 to vector<64x128xf32>
    %85 = arith.addf %84, %83 : vector<64x128xf32>
    %86 = arith.divf %84, %85 : vector<64x128xf32>
    %87 = arith.mulf %81, %86 : vector<64x128xf32>
    %88 = arith.truncf %87 : vector<64x128xf32> to vector<64x128xbf16>
    %cst_40 = arith.constant dense<0.000000e+00> : vector<64x64xf32>
    %89 = tpu.matmul %88, %66, %cst_40 {dimension_numbers = #tpu.dot_dimension_numbers<[1], [0], [0], [1], [0, 0, 1, 1], [], []>} : vector<64x128xbf16>, vector<128x64xbf16>, vector<64x64xf32> -> vector<64x64xf32>
    %90 = vector.broadcast %67 : vector<1x64xf32> to vector<64x64xf32>
    %91 = arith.addf %89, %90 : vector<64x64xf32>
    %92 = vector.extract_strided_slice %91 {offsets = [0, 0], sizes = [64, 32], strides = [1, 1]} : vector<64x64xf32> to vector<64x32xf32>
    %93 = vector.extract_strided_slice %91 {offsets = [0, 32], sizes = [64, 32], strides = [1, 1]} : vector<64x64xf32> to vector<64x32xf32>
    %94 = arith.negf %92 : vector<64x32xf32>
    %95 = math.exp %94 : vector<64x32xf32>
    %cst_41 = arith.constant 1.000000e+00 : f32
    %96 = vector.broadcast %cst_41 : f32 to vector<64x32xf32>
    %97 = arith.addf %96, %95 : vector<64x32xf32>
    %98 = arith.divf %96, %97 : vector<64x32xf32>
    %99 = arith.mulf %92, %98 : vector<64x32xf32>
    %100 = arith.negf %93 : vector<64x32xf32>
    %101 = math.exp %100 : vector<64x32xf32>
    %cst_42 = arith.constant 1.000000e+00 : f32
    %102 = vector.broadcast %cst_42 : f32 to vector<64x32xf32>
    %103 = arith.addf %102, %101 : vector<64x32xf32>
    %104 = arith.divf %102, %103 : vector<64x32xf32>
    %105 = arith.mulf %99, %104 : vector<64x32xf32>
    %c0_43 = arith.constant 0 : index
    %c0_44 = arith.constant 0 : index
    %106 = vector.load %arg4[%c0_43, %c0_44] : memref<64x32xf32, #tpu.memory_space<vmem>>, vector<64x32xf32>
    %107 = arith.mulf %105, %106 : vector<64x32xf32>
    %108 = vector.extract_strided_slice %9 {offsets = [0, 64], sizes = [16, 64], strides = [1, 1]} : vector<16x128xbf16> to vector<16x64xbf16>
    %109 = arith.truncf %107 : vector<64x32xf32> to vector<64x32xbf16>
    %cst_45 = arith.constant dense<0.000000e+00> : vector<16x32xf32>
    %110 = tpu.matmul %108, %109, %cst_45 {dimension_numbers = #tpu.dot_dimension_numbers<[1], [0], [0], [1], [0, 0, 1, 1], [], []>} : vector<16x64xbf16>, vector<64x32xbf16>, vector<16x32xf32> -> vector<16x32xf32>
    %111 = arith.truncf %110 : vector<16x32xf32> to vector<16x32xbf16>
    %c0_46 = arith.constant 0 : index
    %c0_47 = arith.constant 0 : index
    %112 = vector.load %arg14[%c0_46, %c0_47] : memref<32x32xbf16, #tpu.memory_space<vmem>>, vector<32x32xbf16>
    %cst_48 = arith.constant dense<0.000000e+00> : vector<16x32xf32>
    %113 = tpu.matmul %111, %112, %cst_48 {dimension_numbers = #tpu.dot_dimension_numbers<[1], [0], [0], [1], [0, 0, 1, 1], [], []>} : vector<16x32xbf16>, vector<32x32xbf16>, vector<16x32xf32> -> vector<16x32xf32>
    %114 = arith.addf %0, %113 : vector<16x32xf32>
    %c0_49 = arith.constant 0 : index
    %c0_50 = arith.constant 0 : index
    %115 = vector.load %arg17[%c0_49, %c0_50] : memref<16x32xf32, #tpu.memory_space<vmem>>, vector<16x32xf32>
    tpu.vector_store %arg17[%c0_49, %c0_50], %114 {strides = array<i32>} : memref<16x32xf32, #tpu.memory_space<vmem>>, vector<16x32xf32>,
    %cst_51 = arith.constant dense<0.000000e+00> : vector<32xf32>
    %116 = vector.multi_reduction <add>, %114, %cst_51 [0] : vector<16x32xf32> to vector<32xf32>
    %117 = vector.shape_cast %116 : vector<32xf32> to vector<1x32xf32>
    %cst_52 = arith.constant 1.600000e+01 : f32
    %118 = vector.broadcast %cst_52 : f32 to vector<1x32xf32>
    %119 = arith.divf %117, %118 : vector<1x32xf32>
    %c0_53 = arith.constant 0 : index
    %c0_54 = arith.constant 0 : index
    %120 = vector.load %arg15[%c0_53, %c0_54] : memref<40x8xf32, #tpu.memory_space<vmem>>, vector<40x8xf32>
    %121 = vector.extract_strided_slice %120 {offsets = [0, 0], sizes = [8, 8], strides = [1, 1]} : vector<40x8xf32> to vector<8x8xf32>
    %cst_55 = arith.constant dense<0.000000e+00> : vector<1x8xf32>
    %122 = tpu.matmul %2, %121, %cst_55 {dimension_numbers = #tpu.dot_dimension_numbers<[1], [0], [0], [1], [0, 0, 1, 1], [], []>} : vector<1x8xf32>, vector<8x8xf32>, vector<1x8xf32> -> vector<1x8xf32>
    %123 = vector.extract_strided_slice %120 {offsets = [8, 0], sizes = [32, 8], strides = [1, 1]} : vector<40x8xf32> to vector<32x8xf32>
    %cst_56 = arith.constant dense<0.000000e+00> : vector<1x8xf32>
    %124 = tpu.matmul %119, %123, %cst_56 {dimension_numbers = #tpu.dot_dimension_numbers<[1], [0], [0], [1], [0, 0, 1, 1], [], []>} : vector<1x32xf32>, vector<32x8xf32>, vector<1x8xf32> -> vector<1x8xf32>
    %125 = arith.addf %122, %124 : vector<1x8xf32>
    %c0_57 = arith.constant 0 : index
    %c0_58 = arith.constant 0 : index
    %126 = vector.load %arg16[%c0_57, %c0_58] : memref<1x8xf32, #tpu.memory_space<vmem>>, vector<1x8xf32>
    %127 = arith.addf %125, %126 : vector<1x8xf32>
    %128 = arith.negf %127 : vector<1x8xf32>
    %129 = math.exp %128 : vector<1x8xf32>
    %cst_59 = arith.constant 1.000000e+00 : f32
    %130 = vector.broadcast %cst_59 : f32 to vector<1x8xf32>
    %131 = arith.addf %130, %129 : vector<1x8xf32>
    %132 = arith.divf %130, %131 : vector<1x8xf32>
    %133 = arith.mulf %127, %132 : vector<1x8xf32>
    %c0_60 = arith.constant 0 : index
    %c0_61 = arith.constant 0 : index
    %134 = vector.load %arg19[%c0_60, %c0_61] : memref<1x8xf32, #tpu.memory_space<vmem>>, vector<1x8xf32>
    tpu.vector_store %arg19[%c0_60, %c0_61], %133 {strides = array<i32>} : memref<1x8xf32, #tpu.memory_space<vmem>>, vector<1x8xf32>,
    return
  }
}

</mosaic_0001>

<llo_original>
// kernel: chgnet_graph_conv.1
$region0: #{chgnet_graph_conv.1}
  #allocation0 [shape = 'u32[]', space=smem, size = 0x4, offset = 0x4, fixed_abs, tag = 'smem constant byte address 0x4 - core index']
  #allocation1 [shape = 'u32[144,128]{1,0:T(1,128)}', space=vmem, size = 0x12000, scoped, tag = 'internal scratch']
  %s0 = inlined_call_operand.vmem [shape: f32[16,32], index: 0, kind: input, shape index: {}, may-alias: {0,17}]
  %s1 = inlined_call_operand.vmem [shape: f32[64,32], index: 1, kind: input, shape index: {}, may-alias: {1,18}]
  %s2 = inlined_call_operand.vmem [shape: f32[1,8], index: 2, kind: input, shape index: {}]
  %s3 = inlined_call_operand.vmem [shape: s32[1,128], index: 3, kind: input, shape index: {}]
  %s4 = inlined_call_operand.vmem [shape: f32[64,32], index: 4, kind: input, shape index: {}]
  %s5 = inlined_call_operand.vmem [shape: f32[64,32], index: 5, kind: input, shape index: {}]
  %s6 = inlined_call_operand.vmem [shape: bf16[104,128], index: 6, kind: input, shape index: {}]
  %s7 = inlined_call_operand.vmem [shape: f32[1,128], index: 7, kind: input, shape index: {}]
  %s8 = inlined_call_operand.vmem [shape: bf16[128,64], index: 8, kind: input, shape index: {}]
  %s9 = inlined_call_operand.vmem [shape: f32[1,64], index: 9, kind: input, shape index: {}]
  %s10 = inlined_call_operand.vmem [shape: bf16[104,128], index: 10, kind: input, shape index: {}]
  %s11 = inlined_call_operand.vmem [shape: f32[1,128], index: 11, kind: input, shape index: {}]
  %s12 = inlined_call_operand.vmem [shape: bf16[128,64], index: 12, kind: input, shape index: {}]
  %s13 = inlined_call_operand.vmem [shape: f32[1,64], index: 13, kind: input, shape index: {}]
  %s14 = inlined_call_operand.vmem [shape: bf16[32,32], index: 14, kind: input, shape index: {}]
  %s15 = inlined_call_operand.vmem [shape: f32[40,8], index: 15, kind: input, shape index: {}]
  %s16 = inlined_call_operand.vmem [shape: f32[1,8], index: 16, kind: input, shape index: {}]
  %s17 = inlined_call_operand.vmem [shape: f32[16,32], index: 17, kind: output, shape index: {0}, may-alias: {0,17}]
  %s18 = inlined_call_operand.vmem [shape: f32[64,32], index: 18, kind: output, shape index: {1}, may-alias: {1,18}]
  %s19 = inlined_call_operand.hbm [shape: f32[1,8], index: 19, kind: output, shape index: {2}]
  %20 = xla_tuple %s17, %s18, %s19
  %s21 = sld [smem:[#allocation0]]
  $region94: #{chgnet_graph_conv.1} parent=0
    _
  %s23 = ssub.s32 1, %s21
  %s24 = scalar_select 0, %s23, %s21
  $region1: #{chgnet_graph_conv.1} parent=0
    #allocation2 [shape = 'u8[512]{0}', space=vmem, size = 0x400, scoped, tag = 'output window, operand 2, single buffered']
    #allocation3 [shape = 's32[1]{0}', space=sflag, size = 0x4, scoped, tag = 'scoped memory for chgnet_graph_conv.1']
    %25 = vsyncpa [#allocation3], 0
    // Predicated region
    $region2: #{chgnet_graph_conv.1} parent=1 // pred_check
      _
    $region3: #{chgnet_graph_conv.1} parent=1 // pred_check_branch
      %27 = sbr.rel (0) target = $region5
    $region4: #{chgnet_graph_conv.1} parent=1 // pred_region
      _
    $region5: #{chgnet_graph_conv.1} parent=1 // pred_fallthru
      _
    // Predicated region
    $region6: #{chgnet_graph_conv.1} parent=1 // pred_check
      _
    $region7: #{chgnet_graph_conv.1} parent=1 // pred_check_branch
      %29 = sbr.rel (0) target = $region9
    $region8: #{chgnet_graph_conv.1} parent=1 // pred_region
      _
    $region9: #{chgnet_graph_conv.1} parent=1 // pred_fallthru
      _
    // Predicated region
    $region10: #{chgnet_graph_conv.1} parent=1 // pred_check
      _
    $region11: #{chgnet_graph_conv.1} parent=1 // pred_check_branch
      %31 = sbr.rel (0) target = $region13
    $region12: #{chgnet_graph_conv.1} parent=1 // pred_region
      _
    $region13: #{chgnet_graph_conv.1} parent=1 // pred_fallthru
      _
    // Predicated region
    $region14: #{chgnet_graph_conv.1} parent=1 // pred_check
      _
    $region15: #{chgnet_graph_conv.1} parent=1 // pred_check_branch
      %33 = sbr.rel (0) target = $region17
    $region16: #{chgnet_graph_conv.1} parent=1 // pred_region
      _
    $region17: #{chgnet_graph_conv.1} parent=1 // pred_fallthru
      _
    // Predicated region
    $region18: #{chgnet_graph_conv.1} parent=1 // pred_check
      _
    $region19: #{chgnet_graph_conv.1} parent=1 // pred_check_branch
      %35 = sbr.rel (0) target = $region21
    $region20: #{chgnet_graph_conv.1} parent=1 // pred_region
      _
    $region21: #{chgnet_graph_conv.1} parent=1 // pred_fallthru
      _
    // Predicated region
    $region22: #{chgnet_graph_conv.1} parent=1 // pred_check
      _
    $region23: #{chgnet_graph_conv.1} parent=1 // pred_check_branch
      %37 = sbr.rel (0) target = $region25
    $region24: #{chgnet_graph_conv.1} parent=1 // pred_region
      _
    $region25: #{chgnet_graph_conv.1} parent=1 // pred_fallthru
      _
    // Predicated region
    $region26: #{chgnet_graph_conv.1} parent=1 // pred_check
      _
    $region27: #{chgnet_graph_conv.1} parent=1 // pred_check_branch
      %39 = sbr.rel (0) target = $region29
    $region28: #{chgnet_graph_conv.1} parent=1 // pred_region
      _
    $region29: #{chgnet_graph_conv.1} parent=1 // pred_fallthru
      _
    // Predicated region
    $region30: #{chgnet_graph_conv.1} parent=1 // pred_check
      _
    $region31: #{chgnet_graph_conv.1} parent=1 // pred_check_branch
      %41 = sbr.rel (0) target = $region33
    $region32: #{chgnet_graph_conv.1} parent=1 // pred_region
      _
    $region33: #{chgnet_graph_conv.1} parent=1 // pred_fallthru
      _
    // Predicated region
    $region34: #{chgnet_graph_conv.1} parent=1 // pred_check
      _
    $region35: #{chgnet_graph_conv.1} parent=1 // pred_check_branch
      %43 = sbr.rel (0) target = $region37
    $region36: #{chgnet_graph_conv.1} parent=1 // pred_region
      _
    $region37: #{chgnet_graph_conv.1} parent=1 // pred_fallthru
      _
    // Predicated region
    $region38: #{chgnet_graph_conv.1} parent=1 // pred_check
      _
    $region39: #{chgnet_graph_conv.1} parent=1 // pred_check_branch
      %45 = sbr.rel (0) target = $region41
    $region40: #{chgnet_graph_conv.1} parent=1 // pred_region
      _
    $region41: #{chgnet_graph_conv.1} parent=1 // pred_fallthru
      _
    // Predicated region
    $region42: #{chgnet_graph_conv.1} parent=1 // pred_check
      _
    $region43: #{chgnet_graph_conv.1} parent=1 // pred_check_branch
      %47 = sbr.rel (0) target = $region45
    $region44: #{chgnet_graph_conv.1} parent=1 // pred_region
      _
    $region45: #{chgnet_graph_conv.1} parent=1 // pred_fallthru
      _
    // Predicated region
    $region46: #{chgnet_graph_conv.1} parent=1 // pred_check
      _
    $region47: #{chgnet_graph_conv.1} parent=1 // pred_check_branch
      %49 = sbr.rel (0) target = $region49
    $region48: #{chgnet_graph_conv.1} parent=1 // pred_region
      _
    $region49: #{chgnet_graph_conv.1} parent=1 // pred_fallthru
      _
    // Predicated region
    $region50: #{chgnet_graph_conv.1} parent=1 // pred_check
      _
    $region51: #{chgnet_graph_conv.1} parent=1 // pred_check_branch
      %51 = sbr.rel (0) target = $region53
    $region52: #{chgnet_graph_conv.1} parent=1 // pred_region
      _
    $region53: #{chgnet_graph_conv.1} parent=1 // pred_fallthru
      _
    // Predicated region
    $region54: #{chgnet_graph_conv.1} parent=1 // pred_check
      _
    $region55: #{chgnet_graph_conv.1} parent=1 // pred_check_branch
      %53 = sbr.rel (0) target = $region57
    $region56: #{chgnet_graph_conv.1} parent=1 // pred_region
      _
    $region57: #{chgnet_graph_conv.1} parent=1 // pred_fallthru
      _
    // Predicated region
    $region58: #{chgnet_graph_conv.1} parent=1 // pred_check
      _
    $region59: #{chgnet_graph_conv.1} parent=1 // pred_check_branch
      %55 = sbr.rel (0) target = $region61
    $region60: #{chgnet_graph_conv.1} parent=1 // pred_region
      _
    $region61: #{chgnet_graph_conv.1} parent=1 // pred_fallthru
      _
    // Predicated region
    $region62: #{chgnet_graph_conv.1} parent=1 // pred_check
      _
    $region63: #{chgnet_graph_conv.1} parent=1 // pred_check_branch
      %57 = sbr.rel (0) target = $region65
    $region64: #{chgnet_graph_conv.1} parent=1 // pred_region
      _
    $region65: #{chgnet_graph_conv.1} parent=1 // pred_fallthru
      _
    // Predicated region
    $region66: #{chgnet_graph_conv.1} parent=1 // pred_check
      _
    $region67: #{chgnet_graph_conv.1} parent=1 // pred_check_branch
      %59 = sbr.rel (0) target = $region69
    $region68: #{chgnet_graph_conv.1} parent=1 // pred_region
      _
    $region69: #{chgnet_graph_conv.1} parent=1 // pred_fallthru
      _
    %v61 = vld [vmem:[%s0] sm:$0xff]
    %v62 = vld [vmem:[%s0 + $0x8] sm:$0xff]
    %v63 = vld [vmem:[%s1] sm:$0xff]
    %v64 = vld [vmem:[%s1 + $0x8] sm:$0xff]
    %v65 = vld [vmem:[%s1 + $0x10] sm:$0xff]
    %v66 = vld [vmem:[%s1 + $0x18] sm:$0xff]
    %v67 = vld [vmem:[%s1 + $0x20] sm:$0xff]
    %v68 = vld [vmem:[%s1 + $0x28] sm:$0xff]
    %v69 = vld [vmem:[%s1 + $0x30] sm:$0xff]
    %v70 = vld [vmem:[%s1 + $0x38] sm:$0xff]
    %v71 = vld [vmem:[%s2] sm:$0x1]
    %v72 = vlaneseq
    %v73 = vshrl.u32 %v72, 7
    %v74 = vadd.s32 %v73, 8
    %v75 = vld [vmem:[%s3] sm:$0x1]
    %v76 = vlaneseq
    %v77 = vshrl.u32 %v76, 7
    %v78 = vsub.s32 0, %v77
    %v79 = vrot.slane %v75, %v78
    %vm80 = vcmp.eq.s32.totalorder %v73, %v79
    %vm81 = vcmp.eq.s32.totalorder %v74, %v79
    %v82 = vsel %vm80, 1, 0
    %v83 = vsel %vm81, 1, 0
    %v84 = vcvt.s32.f32 %v82
    %v85 = vcvt.s32.f32 %v83
    %v86 = vpack.c.bf16 %v85, %v84
    %v87 = vpack.c.bf16 %v62, %v61
    %88 = vxpose.xlu0.c.b16.start [1/8] %v86, 128
    %89 = vxpose.xlu0.c.b16.cont [2/8] 0, 128
    %90 = vxpose.xlu0.c.b16.cont [3/8] 0, 128
    %91 = vxpose.xlu0.c.b16.cont [4/8] 0, 128
    %92 = vxpose.xlu0.c.b16.cont [5/8] 0, 128
    %93 = vxpose.xlu0.c.b16.cont [6/8] 0, 128
    %94 = vxpose.xlu0.c.b16.cont [7/8] 0, 128
    %95 = vxpose.xlu0.c.b16.end [8/8] 0, 128
    %v96 = vpop.trf.xlu0
    %v97 = vpop.trf.xlu0
    %v98 = vpop.trf.xlu0
    %v99 = vpop.trf.xlu0
    %v100 = vpop.trf.xlu0
    %v101 = vpop.trf.xlu0
    %v102 = vpop.trf.xlu0
    %v103 = vpop.trf.xlu0
    %vm104 = vcmask 130048
    %v106 = vsel %vm104, %v96, 0
    %v109 = vsel %vm104, %v97, 0
    %v112 = vsel %vm104, %v98, 0
    %v115 = vsel %vm104, %v99, 0
    %v118 = vsel %vm104, %v100, 0
    %v121 = vsel %vm104, %v101, 0
    %v124 = vsel %vm104, %v102, 0
    %v127 = vsel %vm104, %v103, 0
    %129 = vmatprep.subr.bf16.mxu0 0
    %130 = vmatpush1.bf16.msra.mxu0 %v87
    %131 = vmatprep.subr.bf16.mxu0 0
    %132 = vmatpush1.bf16.msra.mxu0 0
    %133 = vmatprep.subr.bf16.mxu0 0
    %134 = vmatpush1.bf16.msra.mxu0 0
    %135 = vmatprep.subr.bf16.mxu0 0
    %136 = vmatpush1.bf16.msra.mxu0 0
    %137 = vmatprep.subr.bf16.mxu0 0
    %138 = vmatpush1.bf16.msra.mxu0 0
    %139 = vmatprep.subr.bf16.mxu0 0
    %140 = vmatpush1.bf16.msra.mxu0 0
    %141 = vmatprep.subr.bf16.mxu0 0
    %142 = vmatpush1.bf16.msra.mxu0 0
    %143 = vmatprep.subr.bf16.mxu0 0
    %144 = vmatpush1.bf16.msra.mxu0 0
    %145 = vmatprep.subr.bf16.mxu0 0
    %146 = vmatpush1.bf16.msra.mxu0 0
    %147 = vmatprep.subr.bf16.mxu0 0
    %148 = vmatpush1.bf16.msra.mxu0 0
    %149 = vmatprep.subr.bf16.mxu0 0
    %150 = vmatpush1.bf16.msra.mxu0 0
    %151 = vmatprep.subr.bf16.mxu0 0
    %152 = vmatpush1.bf16.msra.mxu0 0
    %153 = vmatprep.subr.bf16.mxu0 0
    %154 = vmatpush1.bf16.msra.mxu0 0
    %155 = vmatprep.subr.bf16.mxu0 0
    %156 = vmatpush1.bf16.msra.mxu0 0
    %157 = vmatprep.subr.bf16.mxu0 0
    %158 = vmatpush1.bf16.msra.mxu0 0
    %159 = vmatprep.subr.bf16.mxu0 0
    %160 = vmatpush1.bf16.msra.mxu0 0
    %161 = vmatprep.mubr.bf16.mxu0 0
    %162 = vmatmul.mubr.bf16.gmra.mrb[0].mxu0 %v106
    %v163 = vpop.f32.mrb[0].mxu0
    %v164 = vadd.f32 0.0, %v163
    %v165 = vpop.f32.mrb[0].mxu0
    %v166 = vpop.f32.mrb[0].mxu0
    %v167 = vadd.f32 0.0, %v166
    %v168 = vpop.f32.mrb[0].mxu0
    %169 = vmatprep.mubr.bf16.mxu0 0
    %170 = vmatmul.mubr.bf16.gmra.mrb[0].mxu0 %v109
    %v171 = vpop.f32.mrb[0].mxu0
    %v172 = vadd.f32 0.0, %v171
    %v173 = vpop.f32.mrb[0].mxu0
    %v174 = vpop.f32.mrb[0].mxu0
    %v175 = vadd.f32 0.0, %v174
    %v176 = vpop.f32.mrb[0].mxu0
    %177 = vmatprep.mubr.bf16.mxu0 0
    %178 = vmatmul.mubr.bf16.gmra.mrb[0].mxu0 %v112
    %v179 = vpop.f32.mrb[0].mxu0
    %v180 = vadd.f32 0.0, %v179
    %v181 = vpop.f32.mrb[0].mxu0
    %v182 = vpop.f32.mrb[0].mxu0
    %v183 = vadd.f32 0.0, %v182
    %v184 = vpop.f32.mrb[0].mxu0
    %185 = vmatprep.mubr.bf16.mxu0 0
    %186 = vmatmul.mubr.bf16.gmra.mrb[0].mxu0 %v115
    %v187 = vpop.f32.mrb[0].mxu0
    %v188 = vadd.f32 0.0, %v187
    %v189 = vpop.f32.mrb[0].mxu0
    %v190 = vpop.f32.mrb[0].mxu0
    %v191 = vadd.f32 0.0, %v190
    %v192 = vpop.f32.mrb[0].mxu0
    %193 = vmatprep.mubr.bf16.mxu0 0
    %194 = vmatmul.mubr.bf16.gmra.mrb[0].mxu0 %v118
    %v195 = vpop.f32.mrb[0].mxu0
    %v196 = vadd.f32 0.0, %v195
    %v197 = vpop.f32.mrb[0].mxu0
    %v198 = vpop.f32.mrb[0].mxu0
    %v199 = vadd.f32 0.0, %v198
    %v200 = vpop.f32.mrb[0].mxu0
    %201 = vmatprep.mubr.bf16.mxu0 0
    %202 = vmatmul.mubr.bf16.gmra.mrb[0].mxu0 %v121
    %v203 = vpop.f32.mrb[0].mxu0
    %v204 = vadd.f32 0.0, %v203
    %v205 = vpop.f32.mrb[0].mxu0
    %v206 = vpop.f32.mrb[0].mxu0
    %v207 = vadd.f32 0.0, %v206
    %v208 = vpop.f32.mrb[0].mxu0
    %209 = vmatprep.mubr.bf16.mxu0 0
    %210 = vmatmul.mubr.bf16.gmra.mrb[0].mxu0 %v124
    %v211 = vpop.f32.mrb[0].mxu0
    %v212 = vadd.f32 0.0, %v211
    %v213 = vpop.f32.mrb[0].mxu0
    %v214 = vpop.f32.mrb[0].mxu0
    %v215 = vadd.f32 0.0, %v214
    %v216 = vpop.f32.mrb[0].mxu0
    %217 = vmatprep.mubr.bf16.mxu0 0
    %218 = vmatmul.mubr.bf16.gmra.mrb[0].mxu0 %v127
    %v219 = vpop.f32.mrb[0].mxu0
    %v220 = vadd.f32 0.0, %v219
    %v221 = vpop.f32.mrb[0].mxu0
    %v222 = vpop.f32.mrb[0].mxu0
    %v223 = vadd.f32 0.0, %v222
    %v224 = vpop.f32.mrb[0].mxu0
    %225 = vdwg.mxu0
    %v226 = vpack.c.bf16 %v167, %v164
    %v227 = vpack.c.bf16 %v175, %v172
    %v228 = vpack.c.bf16 %v183, %v180
    %v229 = vpack.c.bf16 %v191, %v188
    %v230 = vpack.c.bf16 %v199, %v196
    %v231 = vpack.c.bf16 %v207, %v204
    %v232 = vpack.c.bf16 %v215, %v212
    %v233 = vpack.c.bf16 %v223, %v220
    %v234 = vpack.c.bf16 %v71, %v71
    %v235 = vpack.c.bf16 %v64, %v63
    %v236 = vpack.c.bf16 %v66, %v65
    %v237 = vpack.c.bf16 %v68, %v67
    %v238 = vpack.c.bf16 %v70, %v69
    %v239 = vld [vmem:[%s6] sm:$0xf]
    %v240 = vld [vmem:[%s6 + $0x4] sm:$0xf]
    %v241 = vld [vmem:[%s6 + $0x8] sm:$0xf]
    %v242 = vld [vmem:[%s6 + $0xc] sm:$0xf]
    %v243 = vld [vmem:[%s6 + $0x10] sm:$0xf]
    %v244 = vld [vmem:[%s6 + $0x14] sm:$0xf]
    %v245 = vld [vmem:[%s6 + $0x18] sm:$0xf]
    %v246 = vld [vmem:[%s6 + $0x1c] sm:$0xf]
    %v247 = vld [vmem:[%s6 + $0x20] sm:$0xf]
    %v248 = vld [vmem:[%s6 + $0x24] sm:$0xf]
    %v249 = vld [vmem:[%s6 + $0x28] sm:$0xf]
    %v250 = vld [vmem:[%s6 + $0x2c] sm:$0xf]
    %v251 = vld [vmem:[%s6 + $0x30] sm:$0xf]
    %v252 = vld [vmem:[%s7] sm:$0x1]
    %v253 = vld [vmem:[%s8] sm:$0xf]
    %v254 = vld [vmem:[%s8 + $0x4] sm:$0xf]
    %v255 = vld [vmem:[%s8 + $0x8] sm:$0xf]
    %v256 = vld [vmem:[%s8 + $0xc] sm:$0xf]
    %v257 = vld [vmem:[%s8 + $0x10] sm:$0xf]
    %v258 = vld [vmem:[%s8 + $0x14] sm:$0xf]
    %v259 = vld [vmem:[%s8 + $0x18] sm:$0xf]
    %v260 = vld [vmem:[%s8 + $0x1c] sm:$0xf]
    %v261 = vld [vmem:[%s8 + $0x20] sm:$0xf]
    %v262 = vld [vmem:[%s8 + $0x24] sm:$0xf]
    %v263 = vld [vmem:[%s8 + $0x28] sm:$0xf]
    %v264 = vld [vmem:[%s8 + $0x2c] sm:$0xf]
    %v265 = vld [vmem:[%s8 + $0x30] sm:$0xf]
    %v266 = vld [vmem:[%s8 + $0x34] sm:$0xf]
    %v267 = vld [vmem:[%s8 + $0x38] sm:$0xf]
    %v268 = vld [vmem:[%s8 + $0x3c] sm:$0xf]
    %v269 = vld [vmem:[%s9] sm:$0x1]
    %v274 = vunpack.c.l.b16 %v243
    %v275 = vunpack.c.l.b16 %v244
    %v276 = vunpack.c.l.b16 %v245
    %v277 = vunpack.c.l.b16 %v246
    %v278 = vpack.c.b16 %v275, %v274
    %v279 = vpack.c.b16 %v277, %v276
    %vm282 = vcmask 261120
    %v284 = vsel %vm282, %v235, 0
    %v287 = vsel %vm282, %v236, 0
    %v290 = vsel %vm282, %v237, 0
    %v293 = vsel %vm282, %v238, 0
    %295 = vmatprep.subr.bf16.mxu0 0
    %296 = vmatpush1.bf16.msra.mxu0 %v278
    %297 = vmatprep.subr.bf16.mxu0 0
    %298 = vmatpush1.bf16.msra.mxu0 %v279
    %299 = vmatprep.subr.bf16.mxu0 0
    %300 = vmatpush1.bf16.msra.mxu0 0
    %301 = vmatprep.subr.bf16.mxu0 0
    %302 = vmatpush1.bf16.msra.mxu0 0
    %303 = vmatprep.subr.bf16.mxu0 0
    %304 = vmatpush1.bf16.msra.mxu0 0
    %305 = vmatprep.subr.bf16.mxu0 0
    %306 = vmatpush1.bf16.msra.mxu0 0
    %307 = vmatprep.subr.bf16.mxu0 0
    %308 = vmatpush1.bf16.msra.mxu0 0
    %309 = vmatprep.subr.bf16.mxu0 0
    %310 = vmatpush1.bf16.msra.mxu0 0
    %311 = vmatprep.subr.bf16.mxu0 0
    %312 = vmatpush1.bf16.msra.mxu0 0
    %313 = vmatprep.subr.bf16.mxu0 0
    %314 = vmatpush1.bf16.msra.mxu0 0
    %315 = vmatprep.subr.bf16.mxu0 0
    %316 = vmatpush1.bf16.msra.mxu0 0
    %317 = vmatprep.subr.bf16.mxu0 0
    %318 = vmatpush1.bf16.msra.mxu0 0
    %319 = vmatprep.subr.bf16.mxu0 0
    %320 = vmatpush1.bf16.msra.mxu0 0
    %321 = vmatprep.subr.bf16.mxu0 0
    %322 = vmatpush1.bf16.msra.mxu0 0
    %323 = vmatprep.subr.bf16.mxu0 0
    %324 = vmatpush1.bf16.msra.mxu0 0
    %325 = vmatprep.subr.bf16.mxu0 0
    %326 = vmatpush1.bf16.msra.mxu0 0
    %327 = vmatprep.mubr.bf16.mxu0 0
    %328 = vmatmul.mubr.bf16.gmra.mrb[0].mxu0 %v284
    %v329 = vpop.f32.mrb[0].mxu0
    %v330 = vadd.f32 0.0, %v329
    %v331 = vpop.f32.mrb[0].mxu0
    %v332 = vpop.f32.mrb[0].mxu0
    %v333 = vadd.f32 0.0, %v332
    %v334 = vpop.f32.mrb[0].mxu0
    %335 = vmatprep.mubr.bf16.mxu0 0
    %336 = vmatmul.mubr.bf16.gmra.mrb[0].mxu0 %v287
    %v337 = vpop.f32.mrb[0].mxu0
    %v338 = vadd.f32 0.0, %v337
    %v339 = vpop.f32.mrb[0].mxu0
    %v340 = vpop.f32.mrb[0].mxu0
    %v341 = vadd.f32 0.0, %v340
    %v342 = vpop.f32.mrb[0].mxu0
    %343 = vmatprep.mubr.bf16.mxu0 0
    %344 = vmatmul.mubr.bf16.gmra.mrb[0].mxu0 %v290
    %v345 = vpop.f32.mrb[0].mxu0
    %v346 = vadd.f32 0.0, %v345
    %v347 = vpop.f32.mrb[0].mxu0
    %v348 = vpop.f32.mrb[0].mxu0
    %v349 = vadd.f32 0.0, %v348
    %v350 = vpop.f32.mrb[0].mxu0
    %351 = vmatprep.mubr.bf16.mxu0 0
    %352 = vmatmul.mubr.bf16.gmra.mrb[0].mxu0 %v293
    %v353 = vpop.f32.mrb[0].mxu0
    %v354 = vadd.f32 0.0, %v353
    %v355 = vpop.f32.mrb[0].mxu0
    %v356 = vpop.f32.mrb[0].mxu0
    %v357 = vadd.f32 0.0, %v356
    %v358 = vpop.f32.mrb[0].mxu0
    %359 = vdwg.mxu0
    %v364 = vunpack.c.l.b16 %v239
    %v365 = vunpack.c.l.b16 %v240
    %v366 = vunpack.c.l.b16 %v241
    %v367 = vunpack.c.l.b16 %v242
    %v368 = vpack.c.b16 %v365, %v364
    %v369 = vpack.c.b16 %v367, %v366
    %v373 = vsel %vm282, %v226, 0
    %v376 = vsel %vm282, %v227, 0
    %v379 = vsel %vm282, %v228, 0
    %v382 = vsel %vm282, %v229, 0
    %384 = vmatprep.subr.bf16.mxu0 0
    %385 = vmatpush1.bf16.msra.mxu0 %v368
    %386 = vmatprep.subr.bf16.mxu0 0
    %387 = vmatpush1.bf16.msra.mxu0 %v369
    %388 = vmatprep.subr.bf16.mxu0 0
    %389 = vmatpush1.bf16.msra.mxu0 0
    %390 = vmatprep.subr.bf16.mxu0 0
    %391 = vmatpush1.bf16.msra.mxu0 0
    %392 = vmatprep.subr.bf16.mxu0 0
    %393 = vmatpush1.bf16.msra.mxu0 0
    %394 = vmatprep.subr.bf16.mxu0 0
    %395 = vmatpush1.bf16.msra.mxu0 0
    %396 = vmatprep.subr.bf16.mxu0 0
    %397 = vmatpush1.bf16.msra.mxu0 0
    %398 = vmatprep.subr.bf16.mxu0 0
    %399 = vmatpush1.bf16.msra.mxu0 0
    %400 = vmatprep.subr.bf16.mxu0 0
    %401 = vmatpush1.bf16.msra.mxu0 0
    %402 = vmatprep.subr.bf16.mxu0 0
    %403 = vmatpush1.bf16.msra.mxu0 0
    %404 = vmatprep.subr.bf16.mxu0 0
    %405 = vmatpush1.bf16.msra.mxu0 0
    %406 = vmatprep.subr.bf16.mxu0 0
    %407 = vmatpush1.bf16.msra.mxu0 0
    %408 = vmatprep.subr.bf16.mxu0 0
    %409 = vmatpush1.bf16.msra.mxu0 0
    %410 = vmatprep.subr.bf16.mxu0 0
    %411 = vmatpush1.bf16.msra.mxu0 0
    %412 = vmatprep.subr.bf16.mxu0 0
    %413 = vmatpush1.bf16.msra.mxu0 0
    %414 = vmatprep.subr.bf16.mxu0 0
    %415 = vmatpush1.bf16.msra.mxu0 0
    %416 = vmatprep.mubr.bf16.mxu0 0
    %417 = vmatmul.mubr.bf16.gmra.mrb[0].mxu0 %v373
    %v418 = vpop.f32.mrb[0].mxu0
    %v419 = vadd.f32 %v330, %v418
    %v420 = vpop.f32.mrb[0].mxu0
    %v421 = vpop.f32.mrb[0].mxu0
    %v422 = vadd.f32 %v333, %v421
    %v423 = vpop.f32.mrb[0].mxu0
    %424 = vmatprep.mubr.bf16.mxu0 0
    %425 = vmatmul.mubr.bf16.gmra.mrb[0].mxu0 %v376
    %v426 = vpop.f32.mrb[0].mxu0
    %v427 = vadd.f32 %v338, %v426
    %v428 = vpop.f32.mrb[0].mxu0
    %v429 = vpop.f32.mrb[0].mxu0
    %v430 = vadd.f32 %v341, %v429
    %v431 = vpop.f32.mrb[0].mxu0
    %432 = vmatprep.mubr.bf16.mxu0 0
    %433 = vmatmul.mubr.bf16.gmra.mrb[0].mxu0 %v379
    %v434 = vpop.f32.mrb[0].mxu0
    %v435 = vadd.f32 %v346, %v434
    %v436 = vpop.f32.mrb[0].mxu0
    %v437 = vpop.f32.mrb[0].mxu0
    %v438 = vadd.f32 %v349, %v437
    %v439 = vpop.f32.mrb[0].mxu0
    %440 = vmatprep.mubr.bf16.mxu0 0
    %441 = vmatmul.mubr.bf16.gmra.mrb[0].mxu0 %v382
    %v442 = vpop.f32.mrb[0].mxu0
    %v443 = vadd.f32 %v354, %v442
    %v444 = vpop.f32.mrb[0].mxu0
    %v445 = vpop.f32.mrb[0].mxu0
    %v446 = vadd.f32 %v357, %v445
    %v447 = vpop.f32.mrb[0].mxu0
    %448 = vdwg.mxu0
    %v453 = vunpack.c.l.b16 %v247
    %v454 = vunpack.c.l.b16 %v248
    %v455 = vunpack.c.l.b16 %v249
    %v456 = vunpack.c.l.b16 %v250
    %v457 = vpack.c.b16 %v454, %v453
    %v458 = vpack.c.b16 %v456, %v455
    %v462 = vsel %vm282, %v230, 0
    %v465 = vsel %vm282, %v231, 0
    %v468 = vsel %vm282, %v232, 0
    %v471 = vsel %vm282, %v233, 0
    %473 = vmatprep.subr.bf16.mxu0 0
    %474 = vmatpush1.bf16.msra.mxu0 %v457
    %475 = vmatprep.subr.bf16.mxu0 0
    %476 = vmatpush1.bf16.msra.mxu0 %v458
    %477 = vmatprep.subr.bf16.mxu0 0
    %478 = vmatpush1.bf16.msra.mxu0 0
    %479 = vmatprep.subr.bf16.mxu0 0
    %480 = vmatpush1.bf16.msra.mxu0 0
    %481 = vmatprep.subr.bf16.mxu0 0
    %482 = vmatpush1.bf16.msra.mxu0 0
    %483 = vmatprep.subr.bf16.mxu0 0
    %484 = vmatpush1.bf16.msra.mxu0 0
    %485 = vmatprep.subr.bf16.mxu0 0
    %486 = vmatpush1.bf16.msra.mxu0 0
    %487 = vmatprep.subr.bf16.mxu0 0
    %488 = vmatpush1.bf16.msra.mxu0 0
    %489 = vmatprep.subr.bf16.mxu0 0
    %490 = vmatpush1.bf16.msra.mxu0 0
    %491 = vmatprep.subr.bf16.mxu0 0
    %492 = vmatpush1.bf16.msra.mxu0 0
    %493 = vmatprep.subr.bf16.mxu0 0
    %494 = vmatpush1.bf16.msra.mxu0 0
    %495 = vmatprep.subr.bf16.mxu0 0
    %496 = vmatpush1.bf16.msra.mxu0 0
    %497 = vmatprep.subr.bf16.mxu0 0
    %498 = vmatpush1.bf16.msra.mxu0 0
    %499 = vmatprep.subr.bf16.mxu0 0
    %500 = vmatpush1.bf16.msra.mxu0 0
    %501 = vmatprep.subr.bf16.mxu0 0
    %502 = vmatpush1.bf16.msra.mxu0 0
    %503 = vmatprep.subr.bf16.mxu0 0
    %504 = vmatpush1.bf16.msra.mxu0 0
    %505 = vmatprep.mubr.bf16.mxu0 0
    %506 = vmatmul.mubr.bf16.gmra.mrb[0].mxu0 %v462
    %v507 = vpop.f32.mrb[0].mxu0
    %v508 = vadd.f32 0.0, %v507
    %v509 = vpop.f32.mrb[0].mxu0
    %v510 = vpop.f32.mrb[0].mxu0
    %v511 = vadd.f32 0.0, %v510
    %v512 = vpop.f32.mrb[0].mxu0
    %513 = vmatprep.mubr.bf16.mxu0 0
    %514 = vmatmul.mubr.bf16.gmra.mrb[0].mxu0 %v465
    %v515 = vpop.f32.mrb[0].mxu0
    %v516 = vadd.f32 0.0, %v515
    %v517 = vpop.f32.mrb[0].mxu0
    %v518 = vpop.f32.mrb[0].mxu0
    %v519 = vadd.f32 0.0, %v518
    %v520 = vpop.f32.mrb[0].mxu0
    %521 = vmatprep.mubr.bf16.mxu0 0
    %522 = vmatmul.mubr.bf16.gmra.mrb[0].mxu0 %v468
    %v523 = vpop.f32.mrb[0].mxu0
    %v524 = vadd.f32 0.0, %v523
    %v525 = vpop.f32.mrb[0].mxu0
    %v526 = vpop.f32.mrb[0].mxu0
    %v527 = vadd.f32 0.0, %v526
    %v528 = vpop.f32.mrb[0].mxu0
    %529 = vmatprep.mubr.bf16.mxu0 0
    %530 = vmatmul.mubr.bf16.gmra.mrb[0].mxu0 %v471
    %v531 = vpop.f32.mrb[0].mxu0
    %v532 = vadd.f32 0.0, %v531
    %v533 = vpop.f32.mrb[0].mxu0
    %v534 = vpop.f32.mrb[0].mxu0
    %v535 = vadd.f32 0.0, %v534
    %v536 = vpop.f32.mrb[0].mxu0
    %537 = vdwg.mxu0
    %v538 = vadd.f32 %v419, %v508
    %v539 = vadd.f32 %v422, %v511
    %v540 = vadd.f32 %v427, %v516
    %v541 = vadd.f32 %v430, %v519
    %v542 = vadd.f32 %v435, %v524
    %v543 = vadd.f32 %v438, %v527
    %v544 = vadd.f32 %v443, %v532
    %v545 = vadd.f32 %v446, %v535
    %vm546 = vcmask 64512
    %v548 = vsel %vm546, %v234, 0
    %vm550 = vcmask 1043456
    %v552 = vsel %vm550, %v251, 0
    %554 = vmatprep.subr.bf16.mxu0 0
    %555 = vmatpush1.bf16.msra.mxu0 %v552
    %556 = vmatprep.subr.bf16.mxu0 0
    %557 = vmatpush1.bf16.msra.mxu0 0
    %558 = vmatprep.subr.bf16.mxu0 0
    %559 = vmatpush1.bf16.msra.mxu0 0
    %560 = vmatprep.subr.bf16.mxu0 0
    %561 = vmatpush1.bf16.msra.mxu0 0
    %562 = vmatprep.subr.bf16.mxu0 0
    %563 = vmatpush1.bf16.msra.mxu0 0
    %564 = vmatprep.subr.bf16.mxu0 0
    %565 = vmatpush1.bf16.msra.mxu0 0
    %566 = vmatprep.subr.bf16.mxu0 0
    %567 = vmatpush1.bf16.msra.mxu0 0
    %568 = vmatprep.subr.bf16.mxu0 0
    %569 = vmatpush1.bf16.msra.mxu0 0
    %570 = vmatprep.subr.bf16.mxu0 0
    %571 = vmatpush1.bf16.msra.mxu0 0
    %572 = vmatprep.subr.bf16.mxu0 0
    %573 = vmatpush1.bf16.msra.mxu0 0
    %574 = vmatprep.subr.bf16.mxu0 0
    %575 = vmatpush1.bf16.msra.mxu0 0
    %576 = vmatprep.subr.bf16.mxu0 0
    %577 = vmatpush1.bf16.msra.mxu0 0
    %578 = vmatprep.subr.bf16.mxu0 0
    %579 = vmatpush1.bf16.msra.mxu0 0
    %580 = vmatprep.subr.bf16.mxu0 0
    %581 = vmatpush1.bf16.msra.mxu0 0
    %582 = vmatprep.subr.bf16.mxu0 0
    %583 = vmatpush1.bf16.msra.mxu0 0
    %584 = vmatprep.subr.bf16.mxu0 0
    %585 = vmatpush1.bf16.msra.mxu0 0
    %586 = vmatprep.mubr.bf16.mxu0 0
    %587 = vmatmul.mubr.bf16.gmra.mrb[0].mxu0 %v548
    %v588 = vpop.f32.mrb[0].mxu0
    %v589 = vadd.f32 0.0, %v588
    %v590 = vpop.f32.mrb[0].mxu0
    %v591 = vpop.f32.mrb[0].mxu0
    %v592 = vpop.f32.mrb[0].mxu0
    %593 = vdwg.mxu0
    %v594 = vlaneseq
    %v595 = vshrl.u32 %v594, 7
    %v596 = vsub.s32 0, %v595
    %v597 = vrot.slane %v589, %v596
    %v598 = vadd.f32 %v538, %v597
    %v599 = vadd.f32 %v539, %v597
    %v600 = vadd.f32 %v540, %v597
    %v601 = vadd.f32 %v541, %v597
    %v602 = vadd.f32 %v542, %v597
    %v603 = vadd.f32 %v543, %v597
    %v604 = vadd.f32 %v544, %v597
    %v605 = vadd.f32 %v545, %v597
    %v607 = vlaneseq
    %v608 = vshrl.u32 %v607, 7
    %v609 = vsub.s32 0, %v608
    %v610 = vrot.slane %v252, %v609
    %v612 = vadd.f32 %v598, %v610
    %v613 = vadd.f32 %v599, %v610
    %v614 = vadd.f32 %v600, %v610
    %v615 = vadd.f32 %v601, %v610
    %v616 = vadd.f32 %v602, %v610
    %v617 = vadd.f32 %v603, %v610
    %v618 = vadd.f32 %v604, %v610
    %v619 = vadd.f32 %v605, %v610
    %v620 = vxor.u32 %v612, 2147483648
    %v621 = vxor.u32 %v613, 2147483648
    %v622 = vxor.u32 %v614, 2147483648
    %v623 = vxor.u32 %v615, 2147483648
    %v624 = vxor.u32 %v616, 2147483648
    %v625 = vxor.u32 %v617, 2147483648
    %v626 = vxor.u32 %v618, 2147483648
    %v627 = vxor.u32 %v619, 2147483648
    %v628 = vmul.f32 %v620, 1.442695
    %v629 = vpow.pop %v628
    %v630 = vmul.f32 %v621, 1.442695
    %v631 = vpow.pop %v630
    %v632 = vmul.f32 %v622, 1.442695
    %v633 = vpow.pop %v632
    %v634 = vmul.f32 %v623, 1.442695
    %v635 = vpow.pop %v634
    %v636 = vmul.f32 %v624, 1.442695
    %v637 = vpow.pop %v636
    %v638 = vmul.f32 %v625, 1.442695
    %v639 = vpow.pop %v638
    %v640 = vmul.f32 %v626, 1.442695
    %v641 = vpow.pop %v640
    %v642 = vmul.f32 %v627, 1.442695
    %v643 = vpow.pop %v642
    %v644 = vadd.f32 %v629, 1.0
    %v645 = vadd.f32 %v631, 1.0
    %v646 = vadd.f32 %v633, 1.0
    %v647 = vadd.f32 %v635, 1.0
    %v648 = vadd.f32 %v637, 1.0
    %v649 = vadd.f32 %v639, 1.0
    %v650 = vadd.f32 %v641, 1.0
    %v651 = vadd.f32 %v643, 1.0
    %v652 = vrcp.pop %v644
    %v653 = vmul.f32 1.0, %v652
    %v654 = vrcp.pop %v645
    %v655 = vmul.f32 1.0, %v654
    %v656 = vrcp.pop %v646
    %v657 = vmul.f32 1.0, %v656
    %v658 = vrcp.pop %v647
    %v659 = vmul.f32 1.0, %v658
    %v660 = vrcp.pop %v648
    %v661 = vmul.f32 1.0, %v660
    %v662 = vrcp.pop %v649
    %v663 = vmul.f32 1.0, %v662
    %v664 = vrcp.pop %v650
    %v665 = vmul.f32 1.0, %v664
    %v666 = vrcp.pop %v651
    %v667 = vmul.f32 1.0, %v666
    %v668 = vmul.f32 %v612, %v653
    %v669 = vmul.f32 %v613, %v655
    %v670 = vmul.f32 %v614, %v657
    %v671 = vmul.f32 %v615, %v659
    %v672 = vmul.f32 %v616, %v661
    %v673 = vmul.f32 %v617, %v663
    %v674 = vmul.f32 %v618, %v665
    %v675 = vmul.f32 %v619, %v667
    %v676 = vpack.c.bf16 %v669, %v668
    %v677 = vpack.c.bf16 %v671, %v670
    %v678 = vpack.c.bf16 %v673, %v672
    %v679 = vpack.c.bf16 %v675, %v674
    %v681 = vlaneseq
    %v682 = vshrl.u32 %v681, 7
    %v683 = vsub.s32 0, %v682
    %v684 = vrot.slane %v269, %v683
    %v702 = vunpack.c.l.b16 %v253
    %v703 = vunpack.c.l.b16 %v254
    %v704 = vunpack.c.l.b16 %v255
    %v705 = vunpack.c.l.b16 %v256
    %v706 = vunpack.c.l.b16 %v257
    %v707 = vunpack.c.l.b16 %v258
    %v708 = vunpack.c.l.b16 %v259
    %v709 = vunpack.c.l.b16 %v260
    %v710 = vunpack.c.l.b16 %v261
    %v711 = vunpack.c.l.b16 %v262
    %v712 = vunpack.c.l.b16 %v263
    %v713 = vunpack.c.l.b16 %v264
    %v714 = vunpack.c.l.b16 %v265
    %v715 = vunpack.c.l.b16 %v266
    %v716 = vunpack.c.l.b16 %v267
    %v717 = vunpack.c.l.b16 %v268
    %v718 = vpack.c.b16 %v703, %v702
    %v719 = vpack.c.b16 %v705, %v704
    %v720 = vpack.c.b16 %v707, %v706
    %v721 = vpack.c.b16 %v709, %v708
    %v722 = vpack.c.b16 %v711, %v710
    %v723 = vpack.c.b16 %v713, %v712
    %v724 = vpack.c.b16 %v715, %v714
    %v725 = vpack.c.b16 %v717, %v716
    %734 = vmatprep.subr.bf16.mxu0 0
    %735 = vmatpush1.bf16.msra.mxu0 %v718
    %736 = vmatprep.subr.bf16.mxu0 0
    %737 = vmatpush1.bf16.msra.mxu0 %v719
    %738 = vmatprep.subr.bf16.mxu0 0
    %739 = vmatpush1.bf16.msra.mxu0 %v720
    %740 = vmatprep.subr.bf16.mxu0 0
    %741 = vmatpush1.bf16.msra.mxu0 %v721
    %742 = vmatprep.subr.bf16.mxu0 0
    %743 = vmatpush1.bf16.msra.mxu0 %v722
    %744 = vmatprep.subr.bf16.mxu0 0
    %745 = vmatpush1.bf16.msra.mxu0 %v723
    %746 = vmatprep.subr.bf16.mxu0 0
    %747 = vmatpush1.bf16.msra.mxu0 %v724
    %748 = vmatprep.subr.bf16.mxu0 0
    %749 = vmatpush1.bf16.msra.mxu0 %v725
    %750 = vmatprep.subr.bf16.mxu0 0
    %751 = vmatpush1.bf16.msra.mxu0 0
    %752 = vmatprep.subr.bf16.mxu0 0
    %753 = vmatpush1.bf16.msra.mxu0 0
    %754 = vmatprep.subr.bf16.mxu0 0
    %755 = vmatpush1.bf16.msra.mxu0 0
    %756 = vmatprep.subr.bf16.mxu0 0
    %757 = vmatpush1.bf16.msra.mxu0 0
    %758 = vmatprep.subr.bf16.mxu0 0
    %759 = vmatpush1.bf16.msra.mxu0 0
    %760 = vmatprep.subr.bf16.mxu0 0
    %761 = vmatpush1.bf16.msra.mxu0 0
    %762 = vmatprep.subr.bf16.mxu0 0
    %763 = vmatpush1.bf16.msra.mxu0 0
    %764 = vmatprep.subr.bf16.mxu0 0
    %765 = vmatpush1.bf16.msra.mxu0 0
    %766 = vmatprep.mubr.bf16.mxu0 0
    %767 = vmatmul.mubr.bf16.gmra.mrb[0].mxu0 %v676
    %v768 = vpop.f32.mrb[0].mxu0
    %v769 = vadd.f32 %v684, %v768
    %v770 = vpop.f32.mrb[0].mxu0
    %v771 = vpop.f32.mrb[0].mxu0
    %v772 = vadd.f32 %v684, %v771
    %v773 = vpop.f32.mrb[0].mxu0
    %774 = vmatprep.mubr.bf16.mxu0 0
    %775 = vmatmul.mubr.bf16.gmra.mrb[0].mxu0 %v677
    %v776 = vpop.f32.mrb[0].mxu0
    %v777 = vadd.f32 %v684, %v776
    %v778 = vpop.f32.mrb[0].mxu0
    %v779 = vpop.f32.mrb[0].mxu0
    %v780 = vadd.f32 %v684, %v779
    %v781 = vpop.f32.mrb[0].mxu0
    %782 = vmatprep.mubr.bf16.mxu0 0
    %783 = vmatmul.mubr.bf16.gmra.mrb[0].mxu0 %v678
    %v784 = vpop.f32.mrb[0].mxu0
    %v785 = vadd.f32 %v684, %v784
    %v786 = vpop.f32.mrb[0].mxu0
    %v787 = vpop.f32.mrb[0].mxu0
    %v788 = vadd.f32 %v684, %v787
    %v789 = vpop.f32.mrb[0].mxu0
    %790 = vmatprep.mubr.bf16.mxu0 0
    %791 = vmatmul.mubr.bf16.gmra.mrb[0].mxu0 %v679
    %v792 = vpop.f32.mrb[0].mxu0
    %v793 = vadd.f32 %v684, %v792
    %v794 = vpop.f32.mrb[0].mxu0
    %v795 = vpop.f32.mrb[0].mxu0
    %v796 = vadd.f32 %v684, %v795
    %v797 = vpop.f32.mrb[0].mxu0
    %798 = vdwg.mxu0
    %v799 = vxor.u32 %v769, 2147483648
    %v800 = vxor.u32 %v772, 2147483648
    %v801 = vxor.u32 %v777, 2147483648
    %v802 = vxor.u32 %v780, 2147483648
    %v803 = vxor.u32 %v785, 2147483648
    %v804 = vxor.u32 %v788, 2147483648
    %v805 = vxor.u32 %v793, 2147483648
    %v806 = vxor.u32 %v796, 2147483648
    %v807 = vmul.f32 %v799, 1.442695
    %v808 = vpow.pop %v807
    %v809 = vmul.f32 %v800, 1.442695
    %v810 = vpow.pop %v809
    %v811 = vmul.f32 %v801, 1.442695
    %v812 = vpow.pop %v811
    %v813 = vmul.f32 %v802, 1.442695
    %v814 = vpow.pop %v813
    %v815 = vmul.f32 %v803, 1.442695
    %v816 = vpow.pop %v815
    %v817 = vmul.f32 %v804, 1.442695
    %v818 = vpow.pop %v817
    %v819 = vmul.f32 %v805, 1.442695
    %v820 = vpow.pop %v819
    %v821 = vmul.f32 %v806, 1.442695
    %v822 = vpow.pop %v821
    %v823 = vadd.f32 %v808, 1.0
    %v824 = vadd.f32 %v810, 1.0
    %v825 = vadd.f32 %v812, 1.0
    %v826 = vadd.f32 %v814, 1.0
    %v827 = vadd.f32 %v816, 1.0
    %v828 = vadd.f32 %v818, 1.0
    %v829 = vadd.f32 %v820, 1.0
    %v830 = vadd.f32 %v822, 1.0
    %v831 = vrcp.pop %v823
    %v832 = vmul.f32 1.0, %v831
    %v833 = vrcp.pop %v824
    %v834 = vmul.f32 1.0, %v833
    %v835 = vrcp.pop %v825
    %v836 = vmul.f32 1.0, %v835
    %v837 = vrcp.pop %v826
    %v838 = vmul.f32 1.0, %v837
    %v839 = vrcp.pop %v827
    %v840 = vmul.f32 1.0, %v839
    %v841 = vrcp.pop %v828
    %v842 = vmul.f32 1.0, %v841
    %v843 = vrcp.pop %v829
    %v844 = vmul.f32 1.0, %v843
    %v845 = vrcp.pop %v830
    %v846 = vmul.f32 1.0, %v845
    %v847 = vmul.f32 %v769, %v832
    %v848 = vmul.f32 %v772, %v834
    %v849 = vmul.f32 %v777, %v836
    %v850 = vmul.f32 %v780, %v838
    %v851 = vmul.f32 %v785, %v840
    %v852 = vmul.f32 %v788, %v842
    %v853 = vmul.f32 %v793, %v844
    %v854 = vmul.f32 %v796, %v846
    %863 = vrot.lane.b32.xlu0 %v832, 96
    %v864 = vpop.permute.xlu0 %863
    %865 = vrot.lane.b32.xlu0 %v834, 96
    %v866 = vpop.permute.xlu0 %865
    %867 = vrot.lane.b32.xlu0 %v836, 96
    %v868 = vpop.permute.xlu0 %867
    %869 = vrot.lane.b32.xlu0 %v838, 96
    %v870 = vpop.permute.xlu0 %869
    %871 = vrot.lane.b32.xlu0 %v840, 96
    %v872 = vpop.permute.xlu0 %871
    %873 = vrot.lane.b32.xlu0 %v842, 96
    %v874 = vpop.permute.xlu0 %873
    %875 = vrot.lane.b32.xlu0 %v844, 96
    %v876 = vpop.permute.xlu0 %875
    %877 = vrot.lane.b32.xlu0 %v846, 96
    %v878 = vpop.permute.xlu0 %877
    %v887 = vmul.f32 %v847, %v864
    %v888 = vmul.f32 %v848, %v866
    %v889 = vmul.f32 %v849, %v868
    %v890 = vmul.f32 %v850, %v870
    %v891 = vmul.f32 %v851, %v872
    %v892 = vmul.f32 %v852, %v874
    %v893 = vmul.f32 %v853, %v876
    %v894 = vmul.f32 %v854, %v878
    %v895 = vld [vmem:[%s5] sm:$0xff]
    %v896 = vld [vmem:[%s5 + $0x8] sm:$0xff]
    %v897 = vld [vmem:[%s5 + $0x10] sm:$0xff]
    %v898 = vld [vmem:[%s5 + $0x18] sm:$0xff]
    %v899 = vld [vmem:[%s5 + $0x20] sm:$0xff]
    %v900 = vld [vmem:[%s5 + $0x28] sm:$0xff]
    %v901 = vld [vmem:[%s5 + $0x30] sm:$0xff]
    %v902 = vld [vmem:[%s5 + $0x38] sm:$0xff]
    %v903 = vmul.f32 %v887, %v895
    %v904 = vmul.f32 %v888, %v896
    %v905 = vmul.f32 %v889, %v897
    %v906 = vmul.f32 %v890, %v898
    %v907 = vmul.f32 %v891, %v899
    %v908 = vmul.f32 %v892, %v900
    %v909 = vmul.f32 %v893, %v901
    %v910 = vmul.f32 %v894, %v902
    %v911 = vadd.f32 %v63, %v903
    %v912 = vadd.f32 %v64, %v904
    %v913 = vadd.f32 %v65, %v905
    %v914 = vadd.f32 %v66, %v906
    %v915 = vadd.f32 %v67, %v907
    %v916 = vadd.f32 %v68, %v908
    %v917 = vadd.f32 %v69, %v909
    %v918 = vadd.f32 %v70, %v910
    %919 = vst.msk [vmem:[%s18] sm:$0xff] %vm282, %v911
    %920 = vst.msk [vmem:[%s18 + $0x8] sm:$0xff] %vm282, %v912
    %921 = vst.msk [vmem:[%s18 + $0x10] sm:$0xff] %vm282, %v913
    %922 = vst.msk [vmem:[%s18 + $0x18] sm:$0xff] %vm282, %v914
    %923 = vst.msk [vmem:[%s18 + $0x20] sm:$0xff] %vm282, %v915
    %924 = vst.msk [vmem:[%s18 + $0x28] sm:$0xff] %vm282, %v916
    %925 = vst.msk [vmem:[%s18 + $0x30] sm:$0xff] %vm282, %v917
    %926 = vst.msk [vmem:[%s18 + $0x38] sm:$0xff] %vm282, %v918
    %v927 = vpack.c.bf16 %v912, %v911
    %v928 = vpack.c.bf16 %v914, %v913
    %v929 = vpack.c.bf16 %v916, %v915
    %v930 = vpack.c.bf16 %v918, %v917
    %v931 = vld [vmem:[%s10] sm:$0xf]
    %v932 = vld [vmem:[%s10 + $0x4] sm:$0xf]
    %v933 = vld [vmem:[%s10 + $0x8] sm:$0xf]
    %v934 = vld [vmem:[%s10 + $0xc] sm:$0xf]
    %v935 = vld [vmem:[%s10 + $0x10] sm:$0xf]
    %v936 = vld [vmem:[%s10 + $0x14] sm:$0xf]
    %v937 = vld [vmem:[%s10 + $0x18] sm:$0xf]
    %v938 = vld [vmem:[%s10 + $0x1c] sm:$0xf]
    %v939 = vld [vmem:[%s10 + $0x20] sm:$0xf]
    %v940 = vld [vmem:[%s10 + $0x24] sm:$0xf]
    %v941 = vld [vmem:[%s10 + $0x28] sm:$0xf]
    %v942 = vld [vmem:[%s10 + $0x2c] sm:$0xf]
    %v943 = vld [vmem:[%s10 + $0x30] sm:$0xf]
    %v944 = vld [vmem:[%s11] sm:$0x1]
    %v945 = vld [vmem:[%s12] sm:$0xf]
    %v946 = vld [vmem:[%s12 + $0x4] sm:$0xf]
    %v947 = vld [vmem:[%s12 + $0x8] sm:$0xf]
    %v948 = vld [vmem:[%s12 + $0xc] sm:$0xf]
    %v949 = vld [vmem:[%s12 + $0x10] sm:$0xf]
    %v950 = vld [vmem:[%s12 + $0x14] sm:$0xf]
    %v951 = vld [vmem:[%s12 + $0x18] sm:$0xf]
    %v952 = vld [vmem:[%s12 + $0x1c] sm:$0xf]
    %v953 = vld [vmem:[%s12 + $0x20] sm:$0xf]
    %v954 = vld [vmem:[%s12 + $0x24] sm:$0xf]
    %v955 = vld [vmem:[%s12 + $0x28] sm:$0xf]
    %v956 = vld [vmem:[%s12 + $0x2c] sm:$0xf]
    %v957 = vld [vmem:[%s12 + $0x30] sm:$0xf]
    %v958 = vld [vmem:[%s12 + $0x34] sm:$0xf]
    %v959 = vld [vmem:[%s12 + $0x38] sm:$0xf]
    %v960 = vld [vmem:[%s12 + $0x3c] sm:$0xf]
    %v961 = vld [vmem:[%s13] sm:$0x1]
    %v966 = vunpack.c.l.b16 %v935
    %v967 = vunpack.c.l.b16 %v936
    %v968 = vunpack.c.l.b16 %v937
    %v969 = vunpack.c.l.b16 %v938
    %v970 = vpack.c.b16 %v967, %v966
    %v971 = vpack.c.b16 %v969, %v968
    %v975 = vsel %vm282, %v927, 0
    %v978 = vsel %vm282, %v928, 0
    %v981 = vsel %vm282, %v929, 0
    %v984 = vsel %vm282, %v930, 0
    %986 = vmatprep.subr.bf16.mxu0 0
    %987 = vmatpush1.bf16.msra.mxu0 %v970
    %988 = vmatprep.subr.bf16.mxu0 0
    %989 = vmatpush1.bf16.msra.mxu0 %v971
    %990 = vmatprep.subr.bf16.mxu0 0
    %991 = vmatpush1.bf16.msra.mxu0 0
    %992 = vmatprep.subr.bf16.mxu0 0
    %993 = vmatpush1.bf16.msra.mxu0 0
    %994 = vmatprep.subr.bf16.mxu0 0
    %995 = vmatpush1.bf16.msra.mxu0 0
    %996 = vmatprep.subr.bf16.mxu0 0
    %997 = vmatpush1.bf16.msra.mxu0 0
    %998 = vmatprep.subr.bf16.mxu0 0
    %999 = vmatpush1.bf16.msra.mxu0 0
    %1000 = vmatprep.subr.bf16.mxu0 0
    %1001 = vmatpush1.bf16.msra.mxu0 0
    %1002 = vmatprep.subr.bf16.mxu0 0
    %1003 = vmatpush1.bf16.msra.mxu0 0
    %1004 = vmatprep.subr.bf16.mxu0 0
    %1005 = vmatpush1.bf16.msra.mxu0 0
    %1006 = vmatprep.subr.bf16.mxu0 0
    %1007 = vmatpush1.bf16.msra.mxu0 0
    %1008 = vmatprep.subr.bf16.mxu0 0
    %1009 = vmatpush1.bf16.msra.mxu0 0
    %1010 = vmatprep.subr.bf16.mxu0 0
    %1011 = vmatpush1.bf16.msra.mxu0 0
    %1012 = vmatprep.subr.bf16.mxu0 0
    %1013 = vmatpush1.bf16.msra.mxu0 0
    %1014 = vmatprep.subr.bf16.mxu0 0
    %1015 = vmatpush1.bf16.msra.mxu0 0
    %1016 = vmatprep.subr.bf16.mxu0 0
    %1017 = vmatpush1.bf16.msra.mxu0 0
    %1018 = vmatprep.mubr.bf16.mxu0 0
    %1019 = vmatmul.mubr.bf16.gmra.mrb[0].mxu0 %v975
    %v1020 = vpop.f32.mrb[0].mxu0
    %v1021 = vadd.f32 0.0, %v1020
    %v1022 = vpop.f32.mrb[0].mxu0
    %v1023 = vpop.f32.mrb[0].mxu0
    %v1024 = vadd.f32 0.0, %v1023
    %v1025 = vpop.f32.mrb[0].mxu0
    %1026 = vmatprep.mubr.bf16.mxu0 0
    %1027 = vmatmul.mubr.bf16.gmra.mrb[0].mxu0 %v978
    %v1028 = vpop.f32.mrb[0].mxu0
    %v1029 = vadd.f32 0.0, %v1028
    %v1030 = vpop.f32.mrb[0].mxu0
    %v1031 = vpop.f32.mrb[0].mxu0
    %v1032 = vadd.f32 0.0, %v1031
    %v1033 = vpop.f32.mrb[0].mxu0
    %1034 = vmatprep.mubr.bf16.mxu0 0
    %1035 = vmatmul.mubr.bf16.gmra.mrb[0].mxu0 %v981
    %v1036 = vpop.f32.mrb[0].mxu0
    %v1037 = vadd.f32 0.0, %v1036
    %v1038 = vpop.f32.mrb[0].mxu0
    %v1039 = vpop.f32.mrb[0].mxu0
    %v1040 = vadd.f32 0.0, %v1039
    %v1041 = vpop.f32.mrb[0].mxu0
    %1042 = vmatprep.mubr.bf16.mxu0 0
    %1043 = vmatmul.mubr.bf16.gmra.mrb[0].mxu0 %v984
    %v1044 = vpop.f32.mrb[0].mxu0
    %v1045 = vadd.f32 0.0, %v1044
    %v1046 = vpop.f32.mrb[0].mxu0
    %v1047 = vpop.f32.mrb[0].mxu0
    %v1048 = vadd.f32 0.0, %v1047
    %v1049 = vpop.f32.mrb[0].mxu0
    %1050 = vdwg.mxu0
    %v1055 = vunpack.c.l.b16 %v931
    %v1056 = vunpack.c.l.b16 %v932
    %v1057 = vunpack.c.l.b16 %v933
    %v1058 = vunpack.c.l.b16 %v934
    %v1059 = vpack.c.b16 %v1056, %v1055
    %v1060 = vpack.c.b16 %v1058, %v1057
    %1063 = vmatprep.subr.bf16.mxu0 0
    %1064 = vmatpush1.bf16.msra.mxu0 %v1059
    %1065 = vmatprep.subr.bf16.mxu0 0
    %1066 = vmatpush1.bf16.msra.mxu0 %v1060
    %1067 = vmatprep.subr.bf16.mxu0 0
    %1068 = vmatpush1.bf16.msra.mxu0 0
    %1069 = vmatprep.subr.bf16.mxu0 0
    %1070 = vmatpush1.bf16.msra.mxu0 0
    %1071 = vmatprep.subr.bf16.mxu0 0
    %1072 = vmatpush1.bf16.msra.mxu0 0
    %1073 = vmatprep.subr.bf16.mxu0 0
    %1074 = vmatpush1.bf16.msra.mxu0 0
    %1075 = vmatprep.subr.bf16.mxu0 0
    %1076 = vmatpush1.bf16.msra.mxu0 0
    %1077 = vmatprep.subr.bf16.mxu0 0
    %1078 = vmatpush1.bf16.msra.mxu0 0
    %1079 = vmatprep.subr.bf16.mxu0 0
    %1080 = vmatpush1.bf16.msra.mxu0 0
    %1081 = vmatprep.subr.bf16.mxu0 0
    %1082 = vmatpush1.bf16.msra.mxu0 0
    %1083 = vmatprep.subr.bf16.mxu0 0
    %1084 = vmatpush1.bf16.msra.mxu0 0
    %1085 = vmatprep.subr.bf16.mxu0 0
    %1086 = vmatpush1.bf16.msra.mxu0 0
    %1087 = vmatprep.subr.bf16.mxu0 0
    %1088 = vmatpush1.bf16.msra.mxu0 0
    %1089 = vmatprep.subr.bf16.mxu0 0
    %1090 = vmatpush1.bf16.msra.mxu0 0
    %1091 = vmatprep.subr.bf16.mxu0 0
    %1092 = vmatpush1.bf16.msra.mxu0 0
    %1093 = vmatprep.subr.bf16.mxu0 0
    %1094 = vmatpush1.bf16.msra.mxu0 0
    %1095 = vmatprep.mubr.bf16.mxu0 0
    %1096 = vmatmul.mubr.bf16.gmra.mrb[0].mxu0 %v373
    %v1097 = vpop.f32.mrb[0].mxu0
    %v1098 = vadd.f32 %v1021, %v1097
    %v1099 = vpop.f32.mrb[0].mxu0
    %v1100 = vpop.f32.mrb[0].mxu0
    %v1101 = vadd.f32 %v1024, %v1100
    %v1102 = vpop.f32.mrb[0].mxu0
    %1103 = vmatprep.mubr.bf16.mxu0 0
    %1104 = vmatmul.mubr.bf16.gmra.mrb[0].mxu0 %v376
    %v1105 = vpop.f32.mrb[0].mxu0
    %v1106 = vadd.f32 %v1029, %v1105
    %v1107 = vpop.f32.mrb[0].mxu0
    %v1108 = vpop.f32.mrb[0].mxu0
    %v1109 = vadd.f32 %v1032, %v1108
    %v1110 = vpop.f32.mrb[0].mxu0
    %1111 = vmatprep.mubr.bf16.mxu0 0
    %1112 = vmatmul.mubr.bf16.gmra.mrb[0].mxu0 %v379
    %v1113 = vpop.f32.mrb[0].mxu0
    %v1114 = vadd.f32 %v1037, %v1113
    %v1115 = vpop.f32.mrb[0].mxu0
    %v1116 = vpop.f32.mrb[0].mxu0
    %v1117 = vadd.f32 %v1040, %v1116
    %v1118 = vpop.f32.mrb[0].mxu0
    %1119 = vmatprep.mubr.bf16.mxu0 0
    %1120 = vmatmul.mubr.bf16.gmra.mrb[0].mxu0 %v382
    %v1121 = vpop.f32.mrb[0].mxu0
    %v1122 = vadd.f32 %v1045, %v1121
    %v1123 = vpop.f32.mrb[0].mxu0
    %v1124 = vpop.f32.mrb[0].mxu0
    %v1125 = vadd.f32 %v1048, %v1124
    %v1126 = vpop.f32.mrb[0].mxu0
    %1127 = vdwg.mxu0
    %v1132 = vunpack.c.l.b16 %v939
    %v1133 = vunpack.c.l.b16 %v940
    %v1134 = vunpack.c.l.b16 %v941
    %v1135 = vunpack.c.l.b16 %v942
    %v1136 = vpack.c.b16 %v1133, %v1132
    %v1137 = vpack.c.b16 %v1135, %v1134
    %1140 = vmatprep.subr.bf16.mxu0 0
    %1141 = vmatpush1.bf16.msra.mxu0 %v1136
    %1142 = vmatprep.subr.bf16.mxu0 0
    %1143 = vmatpush1.bf16.msra.mxu0 %v1137
    %1144 = vmatprep.subr.bf16.mxu0 0
    %1145 = vmatpush1.bf16.msra.mxu0 0
    %1146 = vmatprep.subr.bf16.mxu0 0
    %1147 = vmatpush1.bf16.msra.mxu0 0
    %1148 = vmatprep.subr.bf16.mxu0 0
    %1149 = vmatpush1.bf16.msra.mxu0 0
    %1150 = vmatprep.subr.bf16.mxu0 0
    %1151 = vmatpush1.bf16.msra.mxu0 0
    %1152 = vmatprep.subr.bf16.mxu0 0
    %1153 = vmatpush1.bf16.msra.mxu0 0
    %1154 = vmatprep.subr.bf16.mxu0 0
    %1155 = vmatpush1.bf16.msra.mxu0 0
    %1156 = vmatprep.subr.bf16.mxu0 0
    %1157 = vmatpush1.bf16.msra.mxu0 0
    %1158 = vmatprep.subr.bf16.mxu0 0
    %1159 = vmatpush1.bf16.msra.mxu0 0
    %1160 = vmatprep.subr.bf16.mxu0 0
    %1161 = vmatpush1.bf16.msra.mxu0 0
    %1162 = vmatprep.subr.bf16.mxu0 0
    %1163 = vmatpush1.bf16.msra.mxu0 0
    %1164 = vmatprep.subr.bf16.mxu0 0
    %1165 = vmatpush1.bf16.msra.mxu0 0
    %1166 = vmatprep.subr.bf16.mxu0 0
    %1167 = vmatpush1.bf16.msra.mxu0 0
    %1168 = vmatprep.subr.bf16.mxu0 0
    %1169 = vmatpush1.bf16.msra.mxu0 0
    %1170 = vmatprep.subr.bf16.mxu0 0
    %1171 = vmatpush1.bf16.msra.mxu0 0
    %1172 = vmatprep.mubr.bf16.mxu0 0
    %1173 = vmatmul.mubr.bf16.gmra.mrb[0].mxu0 %v462
    %v1174 = vpop.f32.mrb[0].mxu0
    %v1175 = vadd.f32 0.0, %v1174
    %v1176 = vpop.f32.mrb[0].mxu0
    %v1177 = vpop.f32.mrb[0].mxu0
    %v1178 = vadd.f32 0.0, %v1177
    %v1179 = vpop.f32.mrb[0].mxu0
    %1180 = vmatprep.mubr.bf16.mxu0 0
    %1181 = vmatmul.mubr.bf16.gmra.mrb[0].mxu0 %v465
    %v1182 = vpop.f32.mrb[0].mxu0
    %v1183 = vadd.f32 0.0, %v1182
    %v1184 = vpop.f32.mrb[0].mxu0
    %v1185 = vpop.f32.mrb[0].mxu0
    %v1186 = vadd.f32 0.0, %v1185
    %v1187 = vpop.f32.mrb[0].mxu0
    %1188 = vmatprep.mubr.bf16.mxu0 0
    %1189 = vmatmul.mubr.bf16.gmra.mrb[0].mxu0 %v468
    %v1190 = vpop.f32.mrb[0].mxu0
    %v1191 = vadd.f32 0.0, %v1190
    %v1192 = vpop.f32.mrb[0].mxu0
    %v1193 = vpop.f32.mrb[0].mxu0
    %v1194 = vadd.f32 0.0, %v1193
    %v1195 = vpop.f32.mrb[0].mxu0
    %1196 = vmatprep.mubr.bf16.mxu0 0
    %1197 = vmatmul.mubr.bf16.gmra.mrb[0].mxu0 %v471
    %v1198 = vpop.f32.mrb[0].mxu0
    %v1199 = vadd.f32 0.0, %v1198
    %v1200 = vpop.f32.mrb[0].mxu0
    %v1201 = vpop.f32.mrb[0].mxu0
    %v1202 = vadd.f32 0.0, %v1201
    %v1203 = vpop.f32.mrb[0].mxu0
    %1204 = vdwg.mxu0
    %v1205 = vadd.f32 %v1098, %v1175
    %v1206 = vadd.f32 %v1101, %v1178
    %v1207 = vadd.f32 %v1106, %v1183
    %v1208 = vadd.f32 %v1109, %v1186
    %v1209 = vadd.f32 %v1114, %v1191
    %v1210 = vadd.f32 %v1117, %v1194
    %v1211 = vadd.f32 %v1122, %v1199
    %v1212 = vadd.f32 %v1125, %v1202
    %v1214 = vsel %vm550, %v943, 0
    %1216 = vmatprep.subr.bf16.mxu0 0
    %1217 = vmatpush1.bf16.msra.mxu0 %v1214
    %1218 = vmatprep.subr.bf16.mxu0 0
    %1219 = vmatpush1.bf16.msra.mxu0 0
    %1220 = vmatprep.subr.bf16.mxu0 0
    %1221 = vmatpush1.bf16.msra.mxu0 0
    %1222 = vmatprep.subr.bf16.mxu0 0
    %1223 = vmatpush1.bf16.msra.mxu0 0
    %1224 = vmatprep.subr.bf16.mxu0 0
    %1225 = vmatpush1.bf16.msra.mxu0 0
    %1226 = vmatprep.subr.bf16.mxu0 0
    %1227 = vmatpush1.bf16.msra.mxu0 0
    %1228 = vmatprep.subr.bf16.mxu0 0
    %1229 = vmatpush1.bf16.msra.mxu0 0
    %1230 = vmatprep.subr.bf16.mxu0 0
    %1231 = vmatpush1.bf16.msra.mxu0 0
    %1232 = vmatprep.subr.bf16.mxu0 0
    %1233 = vmatpush1.bf16.msra.mxu0 0
    %1234 = vmatprep.subr.bf16.mxu0 0
    %1235 = vmatpush1.bf16.msra.mxu0 0
    %1236 = vmatprep.subr.bf16.mxu0 0
    %1237 = vmatpush1.bf16.msra.mxu0 0
    %1238 = vmatprep.subr.bf16.mxu0 0
    %1239 = vmatpush1.bf16.msra.mxu0 0
    %1240 = vmatprep.subr.bf16.mxu0 0
    %1241 = vmatpush1.bf16.msra.mxu0 0
    %1242 = vmatprep.subr.bf16.mxu0 0
    %1243 = vmatpush1.bf16.msra.mxu0 0
    %1244 = vmatprep.subr.bf16.mxu0 0
    %1245 = vmatpush1.bf16.msra.mxu0 0
    %1246 = vmatprep.subr.bf16.mxu0 0
    %1247 = vmatpush1.bf16.msra.mxu0 0
    %1248 = vmatprep.mubr.bf16.mxu0 0
    %1249 = vmatmul.mubr.bf16.gmra.mrb[0].mxu0 %v548
    %v1250 = vpop.f32.mrb[0].mxu0
    %v1251 = vadd.f32 0.0, %v1250
    %v1252 = vpop.f32.mrb[0].mxu0
    %v1253 = vpop.f32.mrb[0].mxu0
    %v1254 = vpop.f32.mrb[0].mxu0
    %1255 = vdwg.mxu0
    %v1256 = vlaneseq
    %v1257 = vshrl.u32 %v1256, 7
    %v1258 = vsub.s32 0, %v1257
    %v1259 = vrot.slane %v1251, %v1258
    %v1260 = vadd.f32 %v1205, %v1259
    %v1261 = vadd.f32 %v1206, %v1259
    %v1262 = vadd.f32 %v1207, %v1259
    %v1263 = vadd.f32 %v1208, %v1259
    %v1264 = vadd.f32 %v1209, %v1259
    %v1265 = vadd.f32 %v1210, %v1259
    %v1266 = vadd.f32 %v1211, %v1259
    %v1267 = vadd.f32 %v1212, %v1259
    %v1269 = vlaneseq
    %v1270 = vshrl.u32 %v1269, 7
    %v1271 = vsub.s32 0, %v1270
    %v1272 = vrot.slane %v944, %v1271
    %v1274 = vadd.f32 %v1260, %v1272
    %v1275 = vadd.f32 %v1261, %v1272
    %v1276 = vadd.f32 %v1262, %v1272
    %v1277 = vadd.f32 %v1263, %v1272
    %v1278 = vadd.f32 %v1264, %v1272
    %v1279 = vadd.f32 %v1265, %v1272
    %v1280 = vadd.f32 %v1266, %v1272
    %v1281 = vadd.f32 %v1267, %v1272
    %v1282 = vxor.u32 %v1274, 2147483648
    %v1283 = vxor.u32 %v1275, 2147483648
    %v1284 = vxor.u32 %v1276, 2147483648
    %v1285 = vxor.u32 %v1277, 2147483648
    %v1286 = vxor.u32 %v1278, 2147483648
    %v1287 = vxor.u32 %v1279, 2147483648
    %v1288 = vxor.u32 %v1280, 2147483648
    %v1289 = vxor.u32 %v1281, 2147483648
    %v1290 = vmul.f32 %v1282, 1.442695
    %v1291 = vpow.pop %v1290
    %v1292 = vmul.f32 %v1283, 1.442695
    %v1293 = vpow.pop %v1292
    %v1294 = vmul.f32 %v1284, 1.442695
    %v1295 = vpow.pop %v1294
    %v1296 = vmul.f32 %v1285, 1.442695
    %v1297 = vpow.pop %v1296
    %v1298 = vmul.f32 %v1286, 1.442695
    %v1299 = vpow.pop %v1298
    %v1300 = vmul.f32 %v1287, 1.442695
    %v1301 = vpow.pop %v1300
    %v1302 = vmul.f32 %v1288, 1.442695
    %v1303 = vpow.pop %v1302
    %v1304 = vmul.f32 %v1289, 1.442695
    %v1305 = vpow.pop %v1304
    %v1306 = vadd.f32 %v1291, 1.0
    %v1307 = vadd.f32 %v1293, 1.0
    %v1308 = vadd.f32 %v1295, 1.0
    %v1309 = vadd.f32 %v1297, 1.0
    %v1310 = vadd.f32 %v1299, 1.0
    %v1311 = vadd.f32 %v1301, 1.0
    %v1312 = vadd.f32 %v1303, 1.0
    %v1313 = vadd.f32 %v1305, 1.0
    %v1314 = vrcp.pop %v1306
    %v1315 = vmul.f32 1.0, %v1314
    %v1316 = vrcp.pop %v1307
    %v1317 = vmul.f32 1.0, %v1316
    %v1318 = vrcp.pop %v1308
    %v1319 = vmul.f32 1.0, %v1318
    %v1320 = vrcp.pop %v1309
    %v1321 = vmul.f32 1.0, %v1320
    %v1322 = vrcp.pop %v1310
    %v1323 = vmul.f32 1.0, %v1322
    %v1324 = vrcp.pop %v1311
    %v1325 = vmul.f32 1.0, %v1324
    %v1326 = vrcp.pop %v1312
    %v1327 = vmul.f32 1.0, %v1326
    %v1328 = vrcp.pop %v1313
    %v1329 = vmul.f32 1.0, %v1328
    %v1330 = vmul.f32 %v1274, %v1315
    %v1331 = vmul.f32 %v1275, %v1317
    %v1332 = vmul.f32 %v1276, %v1319
    %v1333 = vmul.f32 %v1277, %v1321
    %v1334 = vmul.f32 %v1278, %v1323
    %v1335 = vmul.f32 %v1279, %v1325
    %v1336 = vmul.f32 %v1280, %v1327
    %v1337 = vmul.f32 %v1281, %v1329
    %v1338 = vpack.c.bf16 %v1331, %v1330
    %v1339 = vpack.c.bf16 %v1333, %v1332
    %v1340 = vpack.c.bf16 %v1335, %v1334
    %v1341 = vpack.c.bf16 %v1337, %v1336
    %v1343 = vlaneseq
    %v1344 = vshrl.u32 %v1343, 7
    %v1345 = vsub.s32 0, %v1344
    %v1346 = vrot.slane %v961, %v1345
    %v1364 = vunpack.c.l.b16 %v945
    %v1365 = vunpack.c.l.b16 %v946
    %v1366 = vunpack.c.l.b16 %v947
    %v1367 = vunpack.c.l.b16 %v948
    %v1368 = vunpack.c.l.b16 %v949
    %v1369 = vunpack.c.l.b16 %v950
    %v1370 = vunpack.c.l.b16 %v951
    %v1371 = vunpack.c.l.b16 %v952
    %v1372 = vunpack.c.l.b16 %v953
    %v1373 = vunpack.c.l.b16 %v954
    %v1374 = vunpack.c.l.b16 %v955
    %v1375 = vunpack.c.l.b16 %v956
    %v1376 = vunpack.c.l.b16 %v957
    %v1377 = vunpack.c.l.b16 %v958
    %v1378 = vunpack.c.l.b16 %v959
    %v1379 = vunpack.c.l.b16 %v960
    %v1380 = vpack.c.b16 %v1365, %v1364
    %v1381 = vpack.c.b16 %v1367, %v1366
    %v1382 = vpack.c.b16 %v1369, %v1368
    %v1383 = vpack.c.b16 %v1371, %v1370
    %v1384 = vpack.c.b16 %v1373, %v1372
    %v1385 = vpack.c.b16 %v1375, %v1374
    %v1386 = vpack.c.b16 %v1377, %v1376
    %v1387 = vpack.c.b16 %v1379, %v1378
    %1396 = vmatprep.subr.bf16.mxu0 0
    %1397 = vmatpush1.bf16.msra.mxu0 %v1380
    %1398 = vmatprep.subr.bf16.mxu0 0
    %1399 = vmatpush1.bf16.msra.mxu0 %v1381
    %1400 = vmatprep.subr.bf16.mxu0 0
    %1401 = vmatpush1.bf16.msra.mxu0 %v1382
    %1402 = vmatprep.subr.bf16.mxu0 0
    %1403 = vmatpush1.bf16.msra.mxu0 %v1383
    %1404 = vmatprep.subr.bf16.mxu0 0
    %1405 = vmatpush1.bf16.msra.mxu0 %v1384
    %1406 = vmatprep.subr.bf16.mxu0 0
    %1407 = vmatpush1.bf16.msra.mxu0 %v1385
    %1408 = vmatprep.subr.bf16.mxu0 0
    %1409 = vmatpush1.bf16.msra.mxu0 %v1386
    %1410 = vmatprep.subr.bf16.mxu0 0
    %1411 = vmatpush1.bf16.msra.mxu0 %v1387
    %1412 = vmatprep.subr.bf16.mxu0 0
    %1413 = vmatpush1.bf16.msra.mxu0 0
    %1414 = vmatprep.subr.bf16.mxu0 0
    %1415 = vmatpush1.bf16.msra.mxu0 0
    %1416 = vmatprep.subr.bf16.mxu0 0
    %1417 = vmatpush1.bf16.msra.mxu0 0
    %1418 = vmatprep.subr.bf16.mxu0 0
    %1419 = vmatpush1.bf16.msra.mxu0 0
    %1420 = vmatprep.subr.bf16.mxu0 0
    %1421 = vmatpush1.bf16.msra.mxu0 0
    %1422 = vmatprep.subr.bf16.mxu0 0
    %1423 = vmatpush1.bf16.msra.mxu0 0
    %1424 = vmatprep.subr.bf16.mxu0 0
    %1425 = vmatpush1.bf16.msra.mxu0 0
    %1426 = vmatprep.subr.bf16.mxu0 0
    %1427 = vmatpush1.bf16.msra.mxu0 0
    %1428 = vmatprep.mubr.bf16.mxu0 0
    %1429 = vmatmul.mubr.bf16.gmra.mrb[0].mxu0 %v1338
    %v1430 = vpop.f32.mrb[0].mxu0
    %v1431 = vadd.f32 %v1346, %v1430
    %v1432 = vpop.f32.mrb[0].mxu0
    %v1433 = vpop.f32.mrb[0].mxu0
    %v1434 = vadd.f32 %v1346, %v1433
    %v1435 = vpop.f32.mrb[0].mxu0
    %1436 = vmatprep.mubr.bf16.mxu0 0
    %1437 = vmatmul.mubr.bf16.gmra.mrb[0].mxu0 %v1339
    %v1438 = vpop.f32.mrb[0].mxu0
    %v1439 = vadd.f32 %v1346, %v1438
    %v1440 = vpop.f32.mrb[0].mxu0
    %v1441 = vpop.f32.mrb[0].mxu0
    %v1442 = vadd.f32 %v1346, %v1441
    %v1443 = vpop.f32.mrb[0].mxu0
    %1444 = vmatprep.mubr.bf16.mxu0 0
    %1445 = vmatmul.mubr.bf16.gmra.mrb[0].mxu0 %v1340
    %v1446 = vpop.f32.mrb[0].mxu0
    %v1447 = vadd.f32 %v1346, %v1446
    %v1448 = vpop.f32.mrb[0].mxu0
    %v1449 = vpop.f32.mrb[0].mxu0
    %v1450 = vadd.f32 %v1346, %v1449
    %v1451 = vpop.f32.mrb[0].mxu0
    %1452 = vmatprep.mubr.bf16.mxu0 0
    %1453 = vmatmul.mubr.bf16.gmra.mrb[0].mxu0 %v1341
    %v1454 = vpop.f32.mrb[0].mxu0
    %v1455 = vadd.f32 %v1346, %v1454
    %v1456 = vpop.f32.mrb[0].mxu0
    %v1457 = vpop.f32.mrb[0].mxu0
    %v1458 = vadd.f32 %v1346, %v1457
    %v1459 = vpop.f32.mrb[0].mxu0
    %1460 = vdwg.mxu0
    %v1461 = vxor.u32 %v1431, 2147483648
    %v1462 = vxor.u32 %v1434, 2147483648
    %v1463 = vxor.u32 %v1439, 2147483648
    %v1464 = vxor.u32 %v1442, 2147483648
    %v1465 = vxor.u32 %v1447, 2147483648
    %v1466 = vxor.u32 %v1450, 2147483648
    %v1467 = vxor.u32 %v1455, 2147483648
    %v1468 = vxor.u32 %v1458, 2147483648
    %v1469 = vmul.f32 %v1461, 1.442695
    %v1470 = vpow.pop %v1469
    %v1471 = vmul.f32 %v1462, 1.442695
    %v1472 = vpow.pop %v1471
    %v1473 = vmul.f32 %v1463, 1.442695
    %v1474 = vpow.pop %v1473
    %v1475 = vmul.f32 %v1464, 1.442695
    %v1476 = vpow.pop %v1475
    %v1477 = vmul.f32 %v1465, 1.442695
    %v1478 = vpow.pop %v1477
    %v1479 = vmul.f32 %v1466, 1.442695
    %v1480 = vpow.pop %v1479
    %v1481 = vmul.f32 %v1467, 1.442695
    %v1482 = vpow.pop %v1481
    %v1483 = vmul.f32 %v1468, 1.442695
    %v1484 = vpow.pop %v1483
    %v1485 = vadd.f32 %v1470, 1.0
    %v1486 = vadd.f32 %v1472, 1.0
    %v1487 = vadd.f32 %v1474, 1.0
    %v1488 = vadd.f32 %v1476, 1.0
    %v1489 = vadd.f32 %v1478, 1.0
    %v1490 = vadd.f32 %v1480, 1.0
    %v1491 = vadd.f32 %v1482, 1.0
    %v1492 = vadd.f32 %v1484, 1.0
    %v1493 = vrcp.pop %v1485
    %v1494 = vmul.f32 1.0, %v1493
    %v1495 = vrcp.pop %v1486
    %v1496 = vmul.f32 1.0, %v1495
    %v1497 = vrcp.pop %v1487
    %v1498 = vmul.f32 1.0, %v1497
    %v1499 = vrcp.pop %v1488
    %v1500 = vmul.f32 1.0, %v1499
    %v1501 = vrcp.pop %v1489
    %v1502 = vmul.f32 1.0, %v1501
    %v1503 = vrcp.pop %v1490
    %v1504 = vmul.f32 1.0, %v1503
    %v1505 = vrcp.pop %v1491
    %v1506 = vmul.f32 1.0, %v1505
    %v1507 = vrcp.pop %v1492
    %v1508 = vmul.f32 1.0, %v1507
    %v1509 = vmul.f32 %v1431, %v1494
    %v1510 = vmul.f32 %v1434, %v1496
    %v1511 = vmul.f32 %v1439, %v1498
    %v1512 = vmul.f32 %v1442, %v1500
    %v1513 = vmul.f32 %v1447, %v1502
    %v1514 = vmul.f32 %v1450, %v1504
    %v1515 = vmul.f32 %v1455, %v1506
    %v1516 = vmul.f32 %v1458, %v1508
    %1525 = vrot.lane.b32.xlu0 %v1494, 96
    %v1526 = vpop.permute.xlu0 %1525
    %1527 = vrot.lane.b32.xlu0 %v1496, 96
    %v1528 = vpop.permute.xlu0 %1527
    %1529 = vrot.lane.b32.xlu0 %v1498, 96
    %v1530 = vpop.permute.xlu0 %1529
    %1531 = vrot.lane.b32.xlu0 %v1500, 96
    %v1532 = vpop.permute.xlu0 %1531
    %1533 = vrot.lane.b32.xlu0 %v1502, 96
    %v1534 = vpop.permute.xlu0 %1533
    %1535 = vrot.lane.b32.xlu0 %v1504, 96
    %v1536 = vpop.permute.xlu0 %1535
    %1537 = vrot.lane.b32.xlu0 %v1506, 96
    %v1538 = vpop.permute.xlu0 %1537
    %1539 = vrot.lane.b32.xlu0 %v1508, 96
    %v1540 = vpop.permute.xlu0 %1539
    %v1549 = vmul.f32 %v1509, %v1526
    %v1550 = vmul.f32 %v1510, %v1528
    %v1551 = vmul.f32 %v1511, %v1530
    %v1552 = vmul.f32 %v1512, %v1532
    %v1553 = vmul.f32 %v1513, %v1534
    %v1554 = vmul.f32 %v1514, %v1536
    %v1555 = vmul.f32 %v1515, %v1538
    %v1556 = vmul.f32 %v1516, %v1540
    %v1557 = vld [vmem:[%s4] sm:$0xff]
    %v1558 = vld [vmem:[%s4 + $0x8] sm:$0xff]
    %v1559 = vld [vmem:[%s4 + $0x10] sm:$0xff]
    %v1560 = vld [vmem:[%s4 + $0x18] sm:$0xff]
    %v1561 = vld [vmem:[%s4 + $0x20] sm:$0xff]
    %v1562 = vld [vmem:[%s4 + $0x28] sm:$0xff]
    %v1563 = vld [vmem:[%s4 + $0x30] sm:$0xff]
    %v1564 = vld [vmem:[%s4 + $0x38] sm:$0xff]
    %v1565 = vmul.f32 %v1549, %v1557
    %v1566 = vmul.f32 %v1550, %v1558
    %v1567 = vmul.f32 %v1551, %v1559
    %v1568 = vmul.f32 %v1552, %v1560
    %v1569 = vmul.f32 %v1553, %v1561
    %v1570 = vmul.f32 %v1554, %v1562
    %v1571 = vmul.f32 %v1555, %v1563
    %v1572 = vmul.f32 %v1556, %v1564
    %v1573 = vpack.c.bf16 %v1566, %v1565
    %v1574 = vpack.c.bf16 %v1568, %v1567
    %v1575 = vpack.c.bf16 %v1570, %v1569
    %v1576 = vpack.c.bf16 %v1572, %v1571
    %1578 = vrot.lane.b32.xlu0 %v86, 64
    %v1579 = vpop.permute.xlu0 %1578
    %vm1580 = vcmask 523264
    %v1582 = vsel %vm1580, %v1579, 0
    %1584 = vmatprep.subr.bf16.mxu0 0
    %1585 = vmatpush1.bf16.msra.mxu0 %v1573
    %1586 = vmatprep.subr.bf16.mxu0 0
    %1587 = vmatpush1.bf16.msra.mxu0 %v1574
    %1588 = vmatprep.subr.bf16.mxu0 0
    %1589 = vmatpush1.bf16.msra.mxu0 %v1575
    %1590 = vmatprep.subr.bf16.mxu0 0
    %1591 = vmatpush1.bf16.msra.mxu0 %v1576
    %1592 = vmatprep.subr.bf16.mxu0 0
    %1593 = vmatpush1.bf16.msra.mxu0 0
    %1594 = vmatprep.subr.bf16.mxu0 0
    %1595 = vmatpush1.bf16.msra.mxu0 0
    %1596 = vmatprep.subr.bf16.mxu0 0
    %1597 = vmatpush1.bf16.msra.mxu0 0
    %1598 = vmatprep.subr.bf16.mxu0 0
    %1599 = vmatpush1.bf16.msra.mxu0 0
    %1600 = vmatprep.subr.bf16.mxu0 0
    %1601 = vmatpush1.bf16.msra.mxu0 0
    %1602 = vmatprep.subr.bf16.mxu0 0
    %1603 = vmatpush1.bf16.msra.mxu0 0
    %1604 = vmatprep.subr.bf16.mxu0 0
    %1605 = vmatpush1.bf16.msra.mxu0 0
    %1606 = vmatprep.subr.bf16.mxu0 0
    %1607 = vmatpush1.bf16.msra.mxu0 0
    %1608 = vmatprep.subr.bf16.mxu0 0
    %1609 = vmatpush1.bf16.msra.mxu0 0
    %1610 = vmatprep.subr.bf16.mxu0 0
    %1611 = vmatpush1.bf16.msra.mxu0 0
    %1612 = vmatprep.subr.bf16.mxu0 0
    %1613 = vmatpush1.bf16.msra.mxu0 0
    %1614 = vmatprep.subr.bf16.mxu0 0
    %1615 = vmatpush1.bf16.msra.mxu0 0
    %1616 = vmatprep.mubr.bf16.mxu0 0
    %1617 = vmatmul.mubr.bf16.gmra.mrb[0].mxu0 %v1582
    %v1618 = vpop.f32.mrb[0].mxu0
    %v1619 = vadd.f32 0.0, %v1618
    %v1620 = vpop.f32.mrb[0].mxu0
    %v1621 = vpop.f32.mrb[0].mxu0
    %v1622 = vadd.f32 0.0, %v1621
    %v1623 = vpop.f32.mrb[0].mxu0
    %1624 = vdwg.mxu0
    %v1625 = vpack.c.bf16 %v1622, %v1619
    %v1626 = vld [vmem:[%s14] sm:$0xf]
    %v1627 = vld [vmem:[%s14 + $0x4] sm:$0xf]
    %v1628 = vld [vmem:[%s14 + $0x8] sm:$0xf]
    %v1629 = vld [vmem:[%s14 + $0xc] sm:$0xf]
    %v1634 = vunpack.c.l.b16 %v1626
    %v1635 = vunpack.c.l.b16 %v1627
    %v1636 = vunpack.c.l.b16 %v1628
    %v1637 = vunpack.c.l.b16 %v1629
    %v1638 = vpack.c.b16 %v1635, %v1634
    %v1639 = vpack.c.b16 %v1637, %v1636
    %v1643 = vsel %vm282, %v1625, 0
    %1645 = vmatprep.subr.bf16.mxu0 0
    %1646 = vmatpush1.bf16.msra.mxu0 %v1638
    %1647 = vmatprep.subr.bf16.mxu0 0
    %1648 = vmatpush1.bf16.msra.mxu0 %v1639
    %1649 = vmatprep.subr.bf16.mxu0 0
    %1650 = vmatpush1.bf16.msra.mxu0 0
    %1651 = vmatprep.subr.bf16.mxu0 0
    %1652 = vmatpush1.bf16.msra.mxu0 0
    %1653 = vmatprep.subr.bf16.mxu0 0
    %1654 = vmatpush1.bf16.msra.mxu0 0
    %1655 = vmatprep.subr.bf16.mxu0 0
    %1656 = vmatpush1.bf16.msra.mxu0 0
    %1657 = vmatprep.subr.bf16.mxu0 0
    %1658 = vmatpush1.bf16.msra.mxu0 0
    %1659 = vmatprep.subr.bf16.mxu0 0
    %1660 = vmatpush1.bf16.msra.mxu0 0
    %1661 = vmatprep.subr.bf16.mxu0 0
    %1662 = vmatpush1.bf16.msra.mxu0 0
    %1663 = vmatprep.subr.bf16.mxu0 0
    %1664 = vmatpush1.bf16.msra.mxu0 0
    %1665 = vmatprep.subr.bf16.mxu0 0
    %1666 = vmatpush1.bf16.msra.mxu0 0
    %1667 = vmatprep.subr.bf16.mxu0 0
    %1668 = vmatpush1.bf16.msra.mxu0 0
    %1669 = vmatprep.subr.bf16.mxu0 0
    %1670 = vmatpush1.bf16.msra.mxu0 0
    %1671 = vmatprep.subr.bf16.mxu0 0
    %1672 = vmatpush1.bf16.msra.mxu0 0
    %1673 = vmatprep.subr.bf16.mxu0 0
    %1674 = vmatpush1.bf16.msra.mxu0 0
    %1675 = vmatprep.subr.bf16.mxu0 0
    %1676 = vmatpush1.bf16.msra.mxu0 0
    %1677 = vmatprep.mubr.bf16.mxu0 0
    %1678 = vmatmul.mubr.bf16.gmra.mrb[0].mxu0 %v1643
    %v1679 = vpop.f32.mrb[0].mxu0
    %v1680 = vadd.f32 0.0, %v1679
    %v1681 = vpop.f32.mrb[0].mxu0
    %v1682 = vpop.f32.mrb[0].mxu0
    %v1683 = vadd.f32 0.0, %v1682
    %v1684 = vpop.f32.mrb[0].mxu0
    %1685 = vdwg.mxu0
    %v1686 = vadd.f32 %v61, %v1680
    %v1687 = vadd.f32 %v62, %v1683
    %1688 = vst.msk [vmem:[%s17] sm:$0xff] %vm282, %v1686
    %1689 = vst.msk [vmem:[%s17 + $0x8] sm:$0xff] %vm282, %v1687
    %v1690 = vsel %vm282, %v1686, 0.0
    %v1691 = vsel %vm282, %v1687, 0.0
    %v1692 = vadd.f32 %v1690, %v1691
    %v1693 = vrot.slane %v1692, 4
    %v1694 = vadd.f32 %v1692, %v1693
    %v1695 = vrot.slane %v1694, 2
    %v1696 = vadd.f32 %v1694, %v1695
    %v1697 = vrot.slane %v1696, 1
    %v1698 = vadd.f32 %v1696, %v1697
    %v1699 = vrcp.pop 16.0
    %v1700 = vmul.f32 %v1698, %v1699
    %v1701 = vld [vmem:[%s15] sm:$0xff]
    %v1702 = vld [vmem:[%s15 + $0x8] sm:$0xff]
    %v1703 = vld [vmem:[%s15 + $0x10] sm:$0xff]
    %v1704 = vld [vmem:[%s15 + $0x18] sm:$0xff]
    %v1705 = vld [vmem:[%s15 + $0x20] sm:$0xff]
    %v1707 = vsel %vm282, %v1700, 0
    %1709 = vmatprep.subr.mxu0 0.0
    %1710 = vmatpush1.msra.mxu0 %v1702
    %1711 = vmatprep.subr.mxu0 0.0
    %1712 = vmatpush1.msra.mxu0 %v1703
    %1713 = vmatprep.subr.mxu0 0.0
    %1714 = vmatpush1.msra.mxu0 %v1704
    %1715 = vmatprep.subr.mxu0 0.0
    %1716 = vmatpush1.msra.mxu0 %v1705
    %1717 = vmatprep.subr.mxu0 0.0
    %1718 = vmatpush1.msra.mxu0 0.0
    %1719 = vmatprep.subr.mxu0 0.0
    %1720 = vmatpush1.msra.mxu0 0.0
    %1721 = vmatprep.subr.mxu0 0.0
    %1722 = vmatpush1.msra.mxu0 0.0
    %1723 = vmatprep.subr.mxu0 0.0
    %1724 = vmatpush1.msra.mxu0 0.0
    %1725 = vmatprep.subr.mxu0 0.0
    %1726 = vmatpush1.msra.mxu0 0.0
    %1727 = vmatprep.subr.mxu0 0.0
    %1728 = vmatpush1.msra.mxu0 0.0
    %1729 = vmatprep.subr.mxu0 0.0
    %1730 = vmatpush1.msra.mxu0 0.0
    %1731 = vmatprep.subr.mxu0 0.0
    %1732 = vmatpush1.msra.mxu0 0.0
    %1733 = vmatprep.subr.mxu0 0.0
    %1734 = vmatpush1.msra.mxu0 0.0
    %1735 = vmatprep.subr.mxu0 0.0
    %1736 = vmatpush1.msra.mxu0 0.0
    %1737 = vmatprep.subr.mxu0 0.0
    %1738 = vmatpush1.msra.mxu0 0.0
    %1739 = vmatprep.subr.mxu0 0.0
    %1740 = vmatpush1.msra.mxu0 0.0
    %1741 = vmatprep.subr.mxu0 0.0
    %1742 = vmatpush1.msra.mxu0 0.0
    %1743 = vmatprep.subr.mxu0 0.0
    %1744 = vmatpush1.msra.mxu0 0.0
    %1745 = vmatprep.subr.mxu0 0.0
    %1746 = vmatpush1.msra.mxu0 0.0
    %1747 = vmatprep.subr.mxu0 0.0
    %1748 = vmatpush1.msra.mxu0 0.0
    %1749 = vmatprep.subr.mxu0 0.0
    %1750 = vmatpush1.msra.mxu0 0.0
    %1751 = vmatprep.subr.mxu0 0.0
    %1752 = vmatpush1.msra.mxu0 0.0
    %1753 = vmatprep.subr.mxu0 0.0
    %1754 = vmatpush1.msra.mxu0 0.0
    %1755 = vmatprep.subr.mxu0 0.0
    %1756 = vmatpush1.msra.mxu0 0.0
    %1757 = vmatprep.subr.mxu0 0.0
    %1758 = vmatpush1.msra.mxu0 0.0
    %1759 = vmatprep.subr.mxu0 0.0
    %1760 = vmatpush1.msra.mxu0 0.0
    %1761 = vmatprep.subr.mxu0 0.0
    %1762 = vmatpush1.msra.mxu0 0.0
    %1763 = vmatprep.subr.mxu0 0.0
    %1764 = vmatpush1.msra.mxu0 0.0
    %1765 = vmatprep.subr.mxu0 0.0
    %1766 = vmatpush1.msra.mxu0 0.0
    %1767 = vmatprep.subr.mxu0 0.0
    %1768 = vmatpush1.msra.mxu0 0.0
    %1769 = vmatprep.subr.mxu0 0.0
    %1770 = vmatpush1.msra.mxu0 0.0
    %1771 = vmatprep.subr.mxu0 0.0
    %1772 = vmatpush1.msra.mxu0 0.0
    %1773 = vmatprep.mubr.f32.mxu0 0.0
    %1774 = vmatmul.mubr.f32.gmra.mrb[0].mxu0 %v1707
    %v1775 = vpop.f32.mrb[0].mxu0
    %v1776 = vadd.f32 0.0, %v1775
    %v1777 = vpop.f32.mrb[0].mxu0
    %1778 = vdwg.mxu0
    %v1780 = vsel %vm546, %v71, 0
    %1782 = vmatprep.subr.mxu0 0.0
    %1783 = vmatpush1.msra.mxu0 %v1701
    %1784 = vmatprep.subr.mxu0 0.0
    %1785 = vmatpush1.msra.mxu0 0.0
    %1786 = vmatprep.subr.mxu0 0.0
    %1787 = vmatpush1.msra.mxu0 0.0
    %1788 = vmatprep.subr.mxu0 0.0
    %1789 = vmatpush1.msra.mxu0 0.0
    %1790 = vmatprep.subr.mxu0 0.0
    %1791 = vmatpush1.msra.mxu0 0.0
    %1792 = vmatprep.subr.mxu0 0.0
    %1793 = vmatpush1.msra.mxu0 0.0
    %1794 = vmatprep.subr.mxu0 0.0
    %1795 = vmatpush1.msra.mxu0 0.0
    %1796 = vmatprep.subr.mxu0 0.0
    %1797 = vmatpush1.msra.mxu0 0.0
    %1798 = vmatprep.subr.mxu0 0.0
    %1799 = vmatpush1.msra.mxu0 0.0
    %1800 = vmatprep.subr.mxu0 0.0
    %1801 = vmatpush1.msra.mxu0 0.0
    %1802 = vmatprep.subr.mxu0 0.0
    %1803 = vmatpush1.msra.mxu0 0.0
    %1804 = vmatprep.subr.mxu0 0.0
    %1805 = vmatpush1.msra.mxu0 0.0
    %1806 = vmatprep.subr.mxu0 0.0
    %1807 = vmatpush1.msra.mxu0 0.0
    %1808 = vmatprep.subr.mxu0 0.0
    %1809 = vmatpush1.msra.mxu0 0.0
    %1810 = vmatprep.subr.mxu0 0.0
    %1811 = vmatpush1.msra.mxu0 0.0
    %1812 = vmatprep.subr.mxu0 0.0
    %1813 = vmatpush1.msra.mxu0 0.0
    %1814 = vmatprep.subr.mxu0 0.0
    %1815 = vmatpush1.msra.mxu0 0.0
    %1816 = vmatprep.subr.mxu0 0.0
    %1817 = vmatpush1.msra.mxu0 0.0
    %1818 = vmatprep.subr.mxu0 0.0
    %1819 = vmatpush1.msra.mxu0 0.0
    %1820 = vmatprep.subr.mxu0 0.0
    %1821 = vmatpush1.msra.mxu0 0.0
    %1822 = vmatprep.subr.mxu0 0.0
    %1823 = vmatpush1.msra.mxu0 0.0
    %1824 = vmatprep.subr.mxu0 0.0
    %1825 = vmatpush1.msra.mxu0 0.0
    %1826 = vmatprep.subr.mxu0 0.0
    %1827 = vmatpush1.msra.mxu0 0.0
    %1828 = vmatprep.subr.mxu0 0.0
    %1829 = vmatpush1.msra.mxu0 0.0
    %1830 = vmatprep.subr.mxu0 0.0
    %1831 = vmatpush1.msra.mxu0 0.0
    %1832 = vmatprep.subr.mxu0 0.0
    %1833 = vmatpush1.msra.mxu0 0.0
    %1834 = vmatprep.subr.mxu0 0.0
    %1835 = vmatpush1.msra.mxu0 0.0
    %1836 = vmatprep.subr.mxu0 0.0
    %1837 = vmatpush1.msra.mxu0 0.0
    %1838 = vmatprep.subr.mxu0 0.0
    %1839 = vmatpush1.msra.mxu0 0.0
    %1840 = vmatprep.subr.mxu0 0.0
    %1841 = vmatpush1.msra.mxu0 0.0
    %1842 = vmatprep.subr.mxu0 0.0
    %1843 = vmatpush1.msra.mxu0 0.0
    %1844 = vmatprep.subr.mxu0 0.0
    %1845 = vmatpush1.msra.mxu0 0.0
    %1846 = vmatprep.mubr.f32.mxu0 0.0
    %1847 = vmatmul.mubr.f32.gmra.mrb[0].mxu0 %v1780
    %v1848 = vpop.f32.mrb[0].mxu0
    %v1849 = vadd.f32 %v1776, %v1848
    %v1850 = vpop.f32.mrb[0].mxu0
    %1851 = vdwg.mxu0
    %v1852 = vld [vmem:[%s16] sm:$0x1]
    %v1853 = vadd.f32 %v1849, %v1852
    %v1854 = vxor.u32 %v1853, 2147483648
    %v1855 = vmul.f32 %v1854, 1.442695
    %v1856 = vpow.pop %v1855
    %v1857 = vadd.f32 %v1856, 1.0
    %v1858 = vrcp.pop %v1857
    %v1859 = vmul.f32 1.0, %v1858
    %v1860 = vmul.f32 %v1853, %v1859
    %vm1861 = vcmask 57344
    %1862 = vst.msk [vmem:[#allocation2] sm:$0x1] %vm1861, %v1860
    // Predicated region
    $region70: #{chgnet_graph_conv.1} parent=1 // pred_check
      _
    $region71: #{chgnet_graph_conv.1} parent=1 // pred_check_branch
      %1864 = sbr.rel (0) target = $region73
    $region72: #{chgnet_graph_conv.1} parent=1 // pred_region
      _
    $region73: #{chgnet_graph_conv.1} parent=1 // pred_fallthru
      _
    // Predicated region
    $region74: #{chgnet_graph_conv.1} parent=1 // pred_check
      _
    $region75: #{chgnet_graph_conv.1} parent=1 // pred_check_branch
      %1866 = sbr.rel (0) target = $region77
    $region76: #{chgnet_graph_conv.1} parent=1 // pred_region
      _
    $region77: #{chgnet_graph_conv.1} parent=1 // pred_fallthru
      _
    // Predicated region
    $region78: #{chgnet_graph_conv.1} parent=1 // pred_check
      _
    $region79: #{chgnet_graph_conv.1} parent=1 // pred_check_branch
      %1868 = sbr.rel (0) target = $region81
    $region80: #{chgnet_graph_conv.1} parent=1 // pred_region
      %s1870 = ssub.s32 16, 16
      %1871 = vsyncadd [#allocation3], %s1870
      %s1873 = sshll.u32 [#allocation2], 4
      %s1874 = int_to_ptr.vmem [resolvable:$true] %s1873
      %1876 = dma.vmem_to_hbm [thread:$0]  %s1874, 16, %s19, [#allocation3]
    $region81: #{chgnet_graph_conv.1} parent=1 // pred_fallthru
      _
    // Predicated region
    $region82: #{chgnet_graph_conv.1} parent=1 // pred_check
      _
    $region83: #{chgnet_graph_conv.1} parent=1 // pred_check_branch
      %1878 = sbr.rel (0) target = $region85
    $region84: #{chgnet_graph_conv.1} parent=1 // pred_region
      _
    $region85: #{chgnet_graph_conv.1} parent=1 // pred_fallthru
      _
    // Predicated region
    $region86: #{chgnet_graph_conv.1} parent=1 // pred_check
      _
    $region87: #{chgnet_graph_conv.1} parent=1 // pred_check_branch
      %1880 = sbr.rel (0) target = $region89
    $region88: #{chgnet_graph_conv.1} parent=1 // pred_region
      _
    $region89: #{chgnet_graph_conv.1} parent=1 // pred_fallthru
      _
    // Predicated region
    $region90: #{chgnet_graph_conv.1} parent=1 // pred_check
      _
    $region91: #{chgnet_graph_conv.1} parent=1 // pred_check_branch
      %1882 = sbr.rel (0) target = $region93
    $region92: #{chgnet_graph_conv.1} parent=1 // pred_region
      %1883 = dma.done [#allocation3], 16
    $region93: #{chgnet_graph_conv.1} parent=1 // pred_fallthru
      _
    %1884 = vsyncpa [#allocation3], 1

</llo_original>
